<compile_context>
chip_gen: v7x
topology: tpu7x:2x2x1
jax: 0.10.0
libtpu: 0.0.40
codegen_flags: <defaults>
</compile_context>

<pallas_src>
import jax
import jax.numpy as jnp
from jax.experimental import pallas as pl
from jax.experimental.pallas import tpu as pltpu


def bottleneck_kernel(x_ref, w1_ref, b1_ref, w2_ref, b2_ref, w3_ref, b3_ref,
                      o_ref, pad_ref, col_ref):
    # x_ref  : (MB, Cin)  f32    MB = images_per_block * H * W
    # w1_ref : (Cin, P)   bf16   b1_ref: (1, P)    f32
    # w2_ref : (9*P, P)   bf16   b2_ref: (1, P)    f32   (host-packed im2col)
    # w3_ref : (P, Cout)  bf16   b3_ref: (1, Cout) f32
    # o_ref  : (MB, Cout) f32
    # pad_ref: (nb, H+2, W+2, P) bf16 scratch (1-px halo for the 3x3 conv)
    # col_ref: (MB, 9*P)         bf16 scratch (im2col patch buffer)
    nb, Hp2, Wp2, P = pad_ref.shape
    H, W = Hp2 - 2, Wp2 - 2
    MB = x_ref.shape[0]

    x = x_ref[...]                                  # f32, kept for the residual

    # --- conv1 (1x1) + bn1 + relu: one (MB,Cin)x(Cin,P) matmul ---------------
    h1 = jnp.dot(x.astype(jnp.bfloat16), w1_ref[...],
                 preferred_element_type=jnp.float32) + b1_ref[...]
    h1 = jnp.maximum(h1, 0.0)

    # --- conv2 (3x3, stride=1, pad=1) + bn2 + relu ---------------------------
    # Zero only the halo border; the interior is fully overwritten below.
    # (Re-zeroed every step so megacore-"parallel" private scratch stays valid.)
    zero_row = jnp.zeros((nb, 1, Wp2, P), pad_ref.dtype)
    zero_col = jnp.zeros((nb, Hp2, 1, P), pad_ref.dtype)
    pad_ref[:, 0:1, :, :] = zero_row
    pad_ref[:, H + 1:H + 2, :, :] = zero_row
    pad_ref[:, :, 0:1, :] = zero_col
    pad_ref[:, :, W + 1:W + 2, :] = zero_col
    pad_ref[:, 1:H + 1, 1:W + 1, :] = (
        h1.astype(jnp.bfloat16).reshape(nb, H, W, P))

    # im2col: 9 static tap copies (bf16) into a (MB, 9*P) buffer, ONE matmul.
    for t in range(9):
        dy, dx = t // 3, t % 3
        col_ref[:, t * P:(t + 1) * P] = (
            pad_ref[:, dy:dy + H, dx:dx + W, :].reshape(MB, P))
    h2 = jnp.dot(col_ref[...], w2_ref[...],
                 preferred_element_type=jnp.float32) + b2_ref[...]
    h2 = jnp.maximum(h2, 0.0)

    # --- conv3 (1x1, expansion 4) + bn3 --------------------------------------
    h3 = jnp.dot(h2.astype(jnp.bfloat16), w3_ref[...],
                 preferred_element_type=jnp.float32) + b3_ref[...]

    # --- identity residual (downsample is None) + relu -----------------------
    o_ref[...] = jnp.maximum(h3 + x, 0.0).astype(o_ref.dtype)


def bottleneck_pallas(x_nhwc, w1, b1, w2p, b2, w3, b3, *,
                      images_per_block=None, vmem_limit_bytes=None):
    """x_nhwc: (N,H,W,Cin) f32.  Weights: BN-folded, bf16, matmul layout."""
    N, H, W, Cin = x_nhwc.shape
    P = w1.shape[1]
    Cout = w3.shape[1]
    assert Cout == Cin, "identity residual requires inplanes == planes * 4"

    if images_per_block is None:
        # Target a few thousand rows per step while keeping >= 2 grid steps
        # (pipelined x/o DMA + v7x megacore sharding).
        rows_per_image = H * W
        target = max(1, 2048 // rows_per_image)
        nb = 1
        for d in range(1, N + 1):
            if N % d == 0 and d <= target and (N // d) >= min(2, N):
                nb = d
    else:
        nb = images_per_block
    assert N % nb == 0
    MB = nb * H * W

    # Raise the scoped VMEM limit only when the estimated per-step footprint
    # needs it; cap at 48 MiB so the same setting is safe on v7x (64 MiB VMEM).
    if vmem_limit_bytes is None:
        est = (2 * MB * Cin * 4                       # x, double-buffered f32
               + 2 * MB * Cout * 4                    # o, double-buffered f32
               + MB * 9 * P * 2                       # col scratch (bf16)
               + nb * (H + 2) * (W + 2) * max(P, 128) * 2   # pad scratch (bf16)
               + (Cin * P + 9 * P * P + P * Cout) * 2       # weights (bf16)
               + (1 << 20))
        if est > (16 << 20):
            vmem_limit_bytes = min(int(est * 3 // 2), 48 << 20)

    # Wrapper-side (free) reshape: kernel sees plain 2-D (rows, channels).
    x2d = x_nhwc.reshape(N * H * W, Cin)

    full = lambda a: pl.BlockSpec(a.shape, lambda g: (0,) * a.ndim)

    cp_kwargs = dict(dimension_semantics=("parallel",))
    if vmem_limit_bytes is not None:
        cp_kwargs["vmem_limit_bytes"] = int(vmem_limit_bytes)

    out2d = pl.pallas_call(
        bottleneck_kernel,
        out_shape=jax.ShapeDtypeStruct((N * H * W, Cout), jnp.float32),
        grid_spec=pltpu.PrefetchScalarGridSpec(
            num_scalar_prefetch=0,
            grid=(N // nb,),
            in_specs=[
                pl.BlockSpec((MB, Cin), lambda g: (g, 0)),
                full(w1), full(b1), full(w2p), full(b2), full(w3), full(b3),
            ],
            out_specs=pl.BlockSpec((MB, Cout), lambda g: (g, 0)),
            scratch_shapes=[
                pltpu.VMEM((nb, H + 2, W + 2, P), jnp.bfloat16),
                pltpu.VMEM((MB, 9 * P), jnp.bfloat16),
            ],
        ),
        compiler_params=pltpu.CompilerParams(**cp_kwargs),
    )(x2d, w1, b1, w2p, b2, w3, b3)
    return out2d.reshape(N, H, W, Cout)


def _fold_bn(gamma, beta, mean, var, eps=1e-5):
    scale = gamma / jnp.sqrt(var + eps)
    bias = beta - mean * scale
    return scale, bias


def _reference(x_nhwc, w1, b1, w2p, b2, w3, b3):
    # Pure-JAX reference with identical math (bf16 MXU operands, f32 accum).
    N, H, W, Cin = x_nhwc.shape
    P = w1.shape[1]
    x2d = x_nhwc.reshape(N * H * W, Cin)
    h1 = jnp.maximum(jnp.dot(x2d.astype(jnp.bfloat16), w1,
                             preferred_element_type=jnp.float32) + b1, 0.0)
    hp = jnp.pad(h1.astype(jnp.bfloat16).reshape(N, H, W, P),
                 ((0, 0), (1, 1), (1, 1), (0, 0)))
    col = jnp.concatenate(
        [hp[:, dy:dy + H, dx:dx + W, :].reshape(N * H * W, P)
         for dy in range(3) for dx in range(3)], axis=-1)
    h2 = jnp.maximum(jnp.dot(col, w2p,
                             preferred_element_type=jnp.float32) + b2, 0.0)
    h3 = jnp.dot(h2.astype(jnp.bfloat16), w3,
                 preferred_element_type=jnp.float32) + b3
    return jnp.maximum(h3 + x2d, 0.0).reshape(N, H, W, Cin)


if __name__ == "__main__":
    # Small shapes consistent with the module: planes=8 -> inplanes = planes*4 = 32
    N, H, W = 2, 8, 8
    planes = 8
    inplanes = planes * 4          # downsample is None -> identity residual

    key = jax.random.PRNGKey(0)
    ks = jax.random.split(key, 16)

    # Input (PyTorch would be NCHW (2, 32, 8, 8)); we work in NHWC.
    x_nchw = jax.random.normal(ks[0], (N, inplanes, H, W), jnp.float32)
    x_nhwc = jnp.transpose(x_nchw, (0, 2, 3, 1))

    # Conv weights (matmul layout), deterministic init.
    w1 = 0.1 * jax.random.normal(ks[1], (inplanes, planes), jnp.float32)
    w2 = 0.1 * jax.random.normal(ks[2], (3, 3, planes, planes), jnp.float32)
    w3 = 0.1 * jax.random.normal(ks[3], (planes, planes * 4), jnp.float32)

    # BatchNorm parameters (inference mode).
    def bn_params(kg, kb, km, kv, c):
        gamma = 1.0 + 0.1 * jax.random.normal(kg, (c,), jnp.float32)
        beta = 0.1 * jax.random.normal(kb, (c,), jnp.float32)
        mean = 0.1 * jax.random.normal(km, (c,), jnp.float32)
        var = jnp.abs(jax.random.normal(kv, (c,), jnp.float32)) + 0.5
        return gamma, beta, mean, var

    g1, be1, m1, v1 = bn_params(ks[4], ks[5], ks[6], ks[7], planes)
    g2, be2, m2, v2 = bn_params(ks[8], ks[9], ks[10], ks[11], planes)
    g3, be3, m3, v3 = bn_params(ks[12], ks[13], ks[14], ks[15], planes * 4)

    s1, b1 = _fold_bn(g1, be1, m1, v1)
    s2, b2 = _fold_bn(g2, be2, m2, v2)
    s3, b3 = _fold_bn(g3, be3, m3, v3)

    # Fold BN scale into conv weights, pack w2 for im2col, cast MXU operands
    # to bf16 (all host-side glue).
    w1f = (w1 * s1[None, :]).astype(jnp.bfloat16)
    w2p = (w2 * s2[None, None, None, :]).reshape(9 * planes, planes).astype(jnp.bfloat16)
    w3f = (w3 * s3[None, :]).astype(jnp.bfloat16)
    b1r = b1.reshape(1, planes).astype(jnp.float32)
    b2r = b2.reshape(1, planes).astype(jnp.float32)
    b3r = b3.reshape(1, planes * 4).astype(jnp.float32)

    out = bottleneck_pallas(x_nhwc, w1f, b1r, w2p, b2r, w3f, b3r)
    out = jax.block_until_ready(out)

    ref = _reference(x_nhwc, w1f, b1r, w2p, b2r, w3f, b3r)
    assert out.shape == (N, H, W, inplanes)
    assert jnp.max(jnp.abs(out - ref)) < 5e-3, "mismatch vs JAX reference"

    print("KERNEL_OK")
</pallas_src>

<mosaic_0001>
module attributes {stable_mosaic.version = 11 : i64} {
  func.func @bottleneck_kernel(%arg0: i32, %arg1: memref<64x32xf32, #tpu.memory_space<vmem>>, %arg2: memref<32x8xbf16, #tpu.memory_space<vmem>>, %arg3: memref<1x8xf32, #tpu.memory_space<vmem>>, %arg4: memref<72x8xbf16, #tpu.memory_space<vmem>>, %arg5: memref<1x8xf32, #tpu.memory_space<vmem>>, %arg6: memref<8x32xbf16, #tpu.memory_space<vmem>>, %arg7: memref<1x32xf32, #tpu.memory_space<vmem>>, %arg8: memref<64x32xf32, #tpu.memory_space<vmem>>, %arg9: memref<1x10x10x8xbf16, #tpu.memory_space<vmem>>, %arg10: memref<64x72xbf16, #tpu.memory_space<vmem>>) attributes {dimension_semantics = [#tpu.dimension_semantics<parallel>], iteration_bounds = array<i64: 2>, scalar_prefetch = 0 : i64, scratch_operands = 2 : i64, tpu.core_type = #tpu.core_type<tc>, window_params = [{transform_indices = @transform_0, window_bounds = array<i64: 64, 32>}, {pipeline_mode = #tpu.pipeline_mode<synchronous>, transform_indices = @transform_1, window_bounds = array<i64: 32, 8>}, {pipeline_mode = #tpu.pipeline_mode<synchronous>, transform_indices = @transform_2, window_bounds = array<i64: 1, 8>}, {pipeline_mode = #tpu.pipeline_mode<synchronous>, transform_indices = @transform_3, window_bounds = array<i64: 72, 8>}, {pipeline_mode = #tpu.pipeline_mode<synchronous>, transform_indices = @transform_4, window_bounds = array<i64: 1, 8>}, {pipeline_mode = #tpu.pipeline_mode<synchronous>, transform_indices = @transform_5, window_bounds = array<i64: 8, 32>}, {pipeline_mode = #tpu.pipeline_mode<synchronous>, transform_indices = @transform_6, window_bounds = array<i64: 1, 32>}, {transform_indices = @transform_7, window_bounds = array<i64: 64, 32>}]} {
    %c0 = arith.constant 0 : index
    %c0_0 = arith.constant 0 : index
    %0 = vector.load %arg1[%c0, %c0_0] : memref<64x32xf32, #tpu.memory_space<vmem>>, vector<64x32xf32>
    %1 = arith.truncf %0 : vector<64x32xf32> to vector<64x32xbf16>
    %c0_1 = arith.constant 0 : index
    %c0_2 = arith.constant 0 : index
    %2 = vector.load %arg2[%c0_1, %c0_2] : memref<32x8xbf16, #tpu.memory_space<vmem>>, vector<32x8xbf16>
    %cst = arith.constant dense<0.000000e+00> : vector<64x8xf32>
    %3 = tpu.matmul %1, %2, %cst {dimension_numbers = #tpu.dot_dimension_numbers<[1], [0], [0], [1], [0, 0, 1, 1], [], []>} : vector<64x32xbf16>, vector<32x8xbf16>, vector<64x8xf32> -> vector<64x8xf32>
    %c0_3 = arith.constant 0 : index
    %c0_4 = arith.constant 0 : index
    %4 = vector.load %arg3[%c0_3, %c0_4] : memref<1x8xf32, #tpu.memory_space<vmem>>, vector<1x8xf32>
    %5 = vector.broadcast %4 : vector<1x8xf32> to vector<64x8xf32>
    %6 = arith.addf %3, %5 : vector<64x8xf32>
    %cst_5 = arith.constant 0.000000e+00 : f32
    %7 = vector.broadcast %cst_5 : f32 to vector<64x8xf32>
    %8 = arith.maximumf %6, %7 : vector<64x8xf32>
    %cst_6 = arith.constant 0.000000e+00 : bf16
    %9 = vector.broadcast %cst_6 : bf16 to vector<1x1x10x8xbf16>
    %cst_7 = arith.constant 0.000000e+00 : bf16
    %10 = vector.broadcast %cst_7 : bf16 to vector<1x10x1x8xbf16>
    %c0_8 = arith.constant 0 : index
    %c0_9 = arith.constant 0 : index
    %c0_10 = arith.constant 0 : index
    %c0_11 = arith.constant 0 : index
    %11 = vector.load %arg9[%c0_8, %c0_9, %c0_10, %c0_11] : memref<1x10x10x8xbf16, #tpu.memory_space<vmem>>, vector<1x1x10x8xbf16>
    tpu.vector_store %arg9[%c0_8, %c0_9, %c0_10, %c0_11], %9 {strides = array<i32>} : memref<1x10x10x8xbf16, #tpu.memory_space<vmem>>, vector<1x1x10x8xbf16>,
    %c0_12 = arith.constant 0 : index
    %c9 = arith.constant 9 : index
    %c0_13 = arith.constant 0 : index
    %c0_14 = arith.constant 0 : index
    %12 = vector.load %arg9[%c0_12, %c9, %c0_13, %c0_14] : memref<1x10x10x8xbf16, #tpu.memory_space<vmem>>, vector<1x1x10x8xbf16>
    tpu.vector_store %arg9[%c0_12, %c9, %c0_13, %c0_14], %9 {strides = array<i32>} : memref<1x10x10x8xbf16, #tpu.memory_space<vmem>>, vector<1x1x10x8xbf16>,
    %c0_15 = arith.constant 0 : index
    %c0_16 = arith.constant 0 : index
    %c0_17 = arith.constant 0 : index
    %c0_18 = arith.constant 0 : index
    %13 = vector.load %arg9[%c0_15, %c0_16, %c0_17, %c0_18] : memref<1x10x10x8xbf16, #tpu.memory_space<vmem>>, vector<1x10x1x8xbf16>
    tpu.vector_store %arg9[%c0_15, %c0_16, %c0_17, %c0_18], %10 {strides = array<i32>} : memref<1x10x10x8xbf16, #tpu.memory_space<vmem>>, vector<1x10x1x8xbf16>,
    %c0_19 = arith.constant 0 : index
    %c0_20 = arith.constant 0 : index
    %c9_21 = arith.constant 9 : index
    %c0_22 = arith.constant 0 : index
    %14 = vector.load %arg9[%c0_19, %c0_20, %c9_21, %c0_22] : memref<1x10x10x8xbf16, #tpu.memory_space<vmem>>, vector<1x10x1x8xbf16>
    tpu.vector_store %arg9[%c0_19, %c0_20, %c9_21, %c0_22], %10 {strides = array<i32>} : memref<1x10x10x8xbf16, #tpu.memory_space<vmem>>, vector<1x10x1x8xbf16>,
    %15 = arith.truncf %8 : vector<64x8xf32> to vector<64x8xbf16>
    %16 = vector.shape_cast %15 : vector<64x8xbf16> to vector<1x8x8x8xbf16>
    %c0_23 = arith.constant 0 : index
    %c1 = arith.constant 1 : index
    %c1_24 = arith.constant 1 : index
    %c0_25 = arith.constant 0 : index
    %17 = vector.load %arg9[%c0_23, %c1, %c1_24, %c0_25] : memref<1x10x10x8xbf16, #tpu.memory_space<vmem>>, vector<1x8x8x8xbf16>
    tpu.vector_store %arg9[%c0_23, %c1, %c1_24, %c0_25], %16 {strides = array<i32>} : memref<1x10x10x8xbf16, #tpu.memory_space<vmem>>, vector<1x8x8x8xbf16>,
    %c0_26 = arith.constant 0 : index
    %c0_27 = arith.constant 0 : index
    %c0_28 = arith.constant 0 : index
    %c0_29 = arith.constant 0 : index
    %18 = vector.load %arg9[%c0_26, %c0_27, %c0_28, %c0_29] : memref<1x10x10x8xbf16, #tpu.memory_space<vmem>>, vector<1x8x8x8xbf16>
    %19 = vector.shape_cast %18 : vector<1x8x8x8xbf16> to vector<64x8xbf16>
    %c0_30 = arith.constant 0 : index
    %c0_31 = arith.constant 0 : index
    %20 = vector.load %arg10[%c0_30, %c0_31] : memref<64x72xbf16, #tpu.memory_space<vmem>>, vector<64x8xbf16>
    tpu.vector_store %arg10[%c0_30, %c0_31], %19 {strides = array<i32>} : memref<64x72xbf16, #tpu.memory_space<vmem>>, vector<64x8xbf16>,
    %c0_32 = arith.constant 0 : index
    %c0_33 = arith.constant 0 : index
    %c1_34 = arith.constant 1 : index
    %c0_35 = arith.constant 0 : index
    %21 = vector.load %arg9[%c0_32, %c0_33, %c1_34, %c0_35] : memref<1x10x10x8xbf16, #tpu.memory_space<vmem>>, vector<1x8x8x8xbf16>
    %22 = vector.shape_cast %21 : vector<1x8x8x8xbf16> to vector<64x8xbf16>
    %c0_36 = arith.constant 0 : index
    %c8 = arith.constant 8 : index
    %23 = vector.load %arg10[%c0_36, %c8] : memref<64x72xbf16, #tpu.memory_space<vmem>>, vector<64x8xbf16>
    tpu.vector_store %arg10[%c0_36, %c8], %22 {strides = array<i32>} : memref<64x72xbf16, #tpu.memory_space<vmem>>, vector<64x8xbf16>,
    %c0_37 = arith.constant 0 : index
    %c0_38 = arith.constant 0 : index
    %c2 = arith.constant 2 : index
    %c0_39 = arith.constant 0 : index
    %24 = vector.load %arg9[%c0_37, %c0_38, %c2, %c0_39] : memref<1x10x10x8xbf16, #tpu.memory_space<vmem>>, vector<1x8x8x8xbf16>
    %25 = vector.shape_cast %24 : vector<1x8x8x8xbf16> to vector<64x8xbf16>
    %c0_40 = arith.constant 0 : index
    %c16 = arith.constant 16 : index
    %26 = vector.load %arg10[%c0_40, %c16] : memref<64x72xbf16, #tpu.memory_space<vmem>>, vector<64x8xbf16>
    tpu.vector_store %arg10[%c0_40, %c16], %25 {strides = array<i32>} : memref<64x72xbf16, #tpu.memory_space<vmem>>, vector<64x8xbf16>,
    %c0_41 = arith.constant 0 : index
    %c1_42 = arith.constant 1 : index
    %c0_43 = arith.constant 0 : index
    %c0_44 = arith.constant 0 : index
    %27 = vector.load %arg9[%c0_41, %c1_42, %c0_43, %c0_44] : memref<1x10x10x8xbf16, #tpu.memory_space<vmem>>, vector<1x8x8x8xbf16>
    %28 = vector.shape_cast %27 : vector<1x8x8x8xbf16> to vector<64x8xbf16>
    %c0_45 = arith.constant 0 : index
    %c24 = arith.constant 24 : index
    %29 = vector.load %arg10[%c0_45, %c24] : memref<64x72xbf16, #tpu.memory_space<vmem>>, vector<64x8xbf16>
    tpu.vector_store %arg10[%c0_45, %c24], %28 {strides = array<i32>} : memref<64x72xbf16, #tpu.memory_space<vmem>>, vector<64x8xbf16>,
    %c0_46 = arith.constant 0 : index
    %c1_47 = arith.constant 1 : index
    %c1_48 = arith.constant 1 : index
    %c0_49 = arith.constant 0 : index
    %30 = vector.load %arg9[%c0_46, %c1_47, %c1_48, %c0_49] : memref<1x10x10x8xbf16, #tpu.memory_space<vmem>>, vector<1x8x8x8xbf16>
    %31 = vector.shape_cast %30 : vector<1x8x8x8xbf16> to vector<64x8xbf16>
    %c0_50 = arith.constant 0 : index
    %c32 = arith.constant 32 : index
    %32 = vector.load %arg10[%c0_50, %c32] : memref<64x72xbf16, #tpu.memory_space<vmem>>, vector<64x8xbf16>
    tpu.vector_store %arg10[%c0_50, %c32], %31 {strides = array<i32>} : memref<64x72xbf16, #tpu.memory_space<vmem>>, vector<64x8xbf16>,
    %c0_51 = arith.constant 0 : index
    %c1_52 = arith.constant 1 : index
    %c2_53 = arith.constant 2 : index
    %c0_54 = arith.constant 0 : index
    %33 = vector.load %arg9[%c0_51, %c1_52, %c2_53, %c0_54] : memref<1x10x10x8xbf16, #tpu.memory_space<vmem>>, vector<1x8x8x8xbf16>
    %34 = vector.shape_cast %33 : vector<1x8x8x8xbf16> to vector<64x8xbf16>
    %c0_55 = arith.constant 0 : index
    %c40 = arith.constant 40 : index
    %35 = vector.load %arg10[%c0_55, %c40] : memref<64x72xbf16, #tpu.memory_space<vmem>>, vector<64x8xbf16>
    tpu.vector_store %arg10[%c0_55, %c40], %34 {strides = array<i32>} : memref<64x72xbf16, #tpu.memory_space<vmem>>, vector<64x8xbf16>,
    %c0_56 = arith.constant 0 : index
    %c2_57 = arith.constant 2 : index
    %c0_58 = arith.constant 0 : index
    %c0_59 = arith.constant 0 : index
    %36 = vector.load %arg9[%c0_56, %c2_57, %c0_58, %c0_59] : memref<1x10x10x8xbf16, #tpu.memory_space<vmem>>, vector<1x8x8x8xbf16>
    %37 = vector.shape_cast %36 : vector<1x8x8x8xbf16> to vector<64x8xbf16>
    %c0_60 = arith.constant 0 : index
    %c48 = arith.constant 48 : index
    %38 = vector.load %arg10[%c0_60, %c48] : memref<64x72xbf16, #tpu.memory_space<vmem>>, vector<64x8xbf16>
    tpu.vector_store %arg10[%c0_60, %c48], %37 {strides = array<i32>} : memref<64x72xbf16, #tpu.memory_space<vmem>>, vector<64x8xbf16>,
    %c0_61 = arith.constant 0 : index
    %c2_62 = arith.constant 2 : index
    %c1_63 = arith.constant 1 : index
    %c0_64 = arith.constant 0 : index
    %39 = vector.load %arg9[%c0_61, %c2_62, %c1_63, %c0_64] : memref<1x10x10x8xbf16, #tpu.memory_space<vmem>>, vector<1x8x8x8xbf16>
    %40 = vector.shape_cast %39 : vector<1x8x8x8xbf16> to vector<64x8xbf16>
    %c0_65 = arith.constant 0 : index
    %c56 = arith.constant 56 : index
    %41 = vector.load %arg10[%c0_65, %c56] : memref<64x72xbf16, #tpu.memory_space<vmem>>, vector<64x8xbf16>
    tpu.vector_store %arg10[%c0_65, %c56], %40 {strides = array<i32>} : memref<64x72xbf16, #tpu.memory_space<vmem>>, vector<64x8xbf16>,
    %c0_66 = arith.constant 0 : index
    %c2_67 = arith.constant 2 : index
    %c2_68 = arith.constant 2 : index
    %c0_69 = arith.constant 0 : index
    %42 = vector.load %arg9[%c0_66, %c2_67, %c2_68, %c0_69] : memref<1x10x10x8xbf16, #tpu.memory_space<vmem>>, vector<1x8x8x8xbf16>
    %43 = vector.shape_cast %42 : vector<1x8x8x8xbf16> to vector<64x8xbf16>
    %c0_70 = arith.constant 0 : index
    %c64 = arith.constant 64 : index
    %44 = vector.load %arg10[%c0_70, %c64] : memref<64x72xbf16, #tpu.memory_space<vmem>>, vector<64x8xbf16>
    tpu.vector_store %arg10[%c0_70, %c64], %43 {strides = array<i32>} : memref<64x72xbf16, #tpu.memory_space<vmem>>, vector<64x8xbf16>,
    %c0_71 = arith.constant 0 : index
    %c0_72 = arith.constant 0 : index
    %45 = vector.load %arg10[%c0_71, %c0_72] : memref<64x72xbf16, #tpu.memory_space<vmem>>, vector<64x72xbf16>
    %c0_73 = arith.constant 0 : index
    %c0_74 = arith.constant 0 : index
    %46 = vector.load %arg4[%c0_73, %c0_74] : memref<72x8xbf16, #tpu.memory_space<vmem>>, vector<72x8xbf16>
    %cst_75 = arith.constant dense<0.000000e+00> : vector<64x8xf32>
    %47 = tpu.matmul %45, %46, %cst_75 {dimension_numbers = #tpu.dot_dimension_numbers<[1], [0], [0], [1], [0, 0, 1, 1], [], []>} : vector<64x72xbf16>, vector<72x8xbf16>, vector<64x8xf32> -> vector<64x8xf32>
    %c0_76 = arith.constant 0 : index
    %c0_77 = arith.constant 0 : index
    %48 = vector.load %arg5[%c0_76, %c0_77] : memref<1x8xf32, #tpu.memory_space<vmem>>, vector<1x8xf32>
    %49 = vector.broadcast %48 : vector<1x8xf32> to vector<64x8xf32>
    %50 = arith.addf %47, %49 : vector<64x8xf32>
    %cst_78 = arith.constant 0.000000e+00 : f32
    %51 = vector.broadcast %cst_78 : f32 to vector<64x8xf32>
    %52 = arith.maximumf %50, %51 : vector<64x8xf32>
    %53 = arith.truncf %52 : vector<64x8xf32> to vector<64x8xbf16>
    %c0_79 = arith.constant 0 : index
    %c0_80 = arith.constant 0 : index
    %54 = vector.load %arg6[%c0_79, %c0_80] : memref<8x32xbf16, #tpu.memory_space<vmem>>, vector<8x32xbf16>
    %cst_81 = arith.constant dense<0.000000e+00> : vector<64x32xf32>
    %55 = tpu.matmul %53, %54, %cst_81 {dimension_numbers = #tpu.dot_dimension_numbers<[1], [0], [0], [1], [0, 0, 1, 1], [], []>} : vector<64x8xbf16>, vector<8x32xbf16>, vector<64x32xf32> -> vector<64x32xf32>
    %c0_82 = arith.constant 0 : index
    %c0_83 = arith.constant 0 : index
    %56 = vector.load %arg7[%c0_82, %c0_83] : memref<1x32xf32, #tpu.memory_space<vmem>>, vector<1x32xf32>
    %57 = vector.broadcast %56 : vector<1x32xf32> to vector<64x32xf32>
    %58 = arith.addf %55, %57 : vector<64x32xf32>
    %59 = arith.addf %58, %0 : vector<64x32xf32>
    %cst_84 = arith.constant 0.000000e+00 : f32
    %60 = vector.broadcast %cst_84 : f32 to vector<64x32xf32>
    %61 = arith.maximumf %59, %60 : vector<64x32xf32>
    %c0_85 = arith.constant 0 : index
    %c0_86 = arith.constant 0 : index
    %62 = vector.load %arg8[%c0_85, %c0_86] : memref<64x32xf32, #tpu.memory_space<vmem>>, vector<64x32xf32>
    tpu.vector_store %arg8[%c0_85, %c0_86], %61 {strides = array<i32>} : memref<64x32xf32, #tpu.memory_space<vmem>>, vector<64x32xf32>,
    return
  }
  func.func @transform_0(%arg0: i32) -> (i32, i32) {
    %c0_i32 = arith.constant 0 : i32
    %c0_i32_0 = arith.constant 0 : i32
    return %arg0, %c0_i32 : i32, i32
  }
  func.func @transform_1(%arg0: i32) -> (i32, i32) {
    %c0_i32 = arith.constant 0 : i32
    %c0_i32_0 = arith.constant 0 : i32
    %c0_i32_1 = arith.constant 0 : i32
    return %c0_i32, %c0_i32_0 : i32, i32
  }
  func.func @transform_2(%arg0: i32) -> (i32, i32) {
    %c0_i32 = arith.constant 0 : i32
    %c0_i32_0 = arith.constant 0 : i32
    %c0_i32_1 = arith.constant 0 : i32
    return %c0_i32, %c0_i32_0 : i32, i32
  }
  func.func @transform_3(%arg0: i32) -> (i32, i32) {
    %c0_i32 = arith.constant 0 : i32
    %c0_i32_0 = arith.constant 0 : i32
    %c0_i32_1 = arith.constant 0 : i32
    return %c0_i32, %c0_i32_0 : i32, i32
  }
  func.func @transform_4(%arg0: i32) -> (i32, i32) {
    %c0_i32 = arith.constant 0 : i32
    %c0_i32_0 = arith.constant 0 : i32
    %c0_i32_1 = arith.constant 0 : i32
    return %c0_i32, %c0_i32_0 : i32, i32
  }
  func.func @transform_5(%arg0: i32) -> (i32, i32) {
    %c0_i32 = arith.constant 0 : i32
    %c0_i32_0 = arith.constant 0 : i32
    %c0_i32_1 = arith.constant 0 : i32
    return %c0_i32, %c0_i32_0 : i32, i32
  }
  func.func @transform_6(%arg0: i32) -> (i32, i32) {
    %c0_i32 = arith.constant 0 : i32
    %c0_i32_0 = arith.constant 0 : i32
    %c0_i32_1 = arith.constant 0 : i32
    return %c0_i32, %c0_i32_0 : i32, i32
  }
  func.func @transform_7(%arg0: i32) -> (i32, i32) {
    %c0_i32 = arith.constant 0 : i32
    %c0_i32_0 = arith.constant 0 : i32
    return %arg0, %c0_i32 : i32, i32
  }
}

</mosaic_0001>

<llo_original>
// kernel: tpu_custom_call.1
$region0: #{tpu_custom_call.1}
  #allocation0 [shape = 'u32[]', space=smem, size = 0x4, offset = 0x4, fixed_abs, tag = 'smem constant byte address 0x4 - core index']
  #allocation1 [shape = 'u32[144,128]{1,0:T(1,128)}', space=vmem, size = 0x12000, scoped, tag = 'internal scratch']
  #allocation2 [shape = 'bf16[1,10,10,8]{3,2,1,0:T(8,128)(2,1)}', space=vmem, size = 0xa000, scoped, tag = 'scratch operand']
  #allocation3 [shape = 'bf16[64,72]{1,0:T(16,128)(2,1)}', space=vmem, size = 0x4000, scoped, tag = 'scratch operand']
  %s0 = inlined_call_operand.vmem [shape: f32[128,32], index: 0, kind: input, shape index: {}]
  %s1 = inlined_call_operand.vmem [shape: bf16[32,8], index: 1, kind: input, shape index: {}]
  %s2 = inlined_call_operand.vmem [shape: f32[1,8], index: 2, kind: input, shape index: {}]
  %s3 = inlined_call_operand.vmem [shape: bf16[72,8], index: 3, kind: input, shape index: {}]
  %s4 = inlined_call_operand.vmem [shape: f32[1,8], index: 4, kind: input, shape index: {}]
  %s5 = inlined_call_operand.vmem [shape: bf16[8,32], index: 5, kind: input, shape index: {}]
  %s6 = inlined_call_operand.vmem [shape: f32[1,32], index: 6, kind: input, shape index: {}]
  %s7 = inlined_call_operand.vmem [shape: f32[128,32], index: 7, kind: output, shape index: {}]
  %s8 = sld [smem:[#allocation0]]
  $region61: #{tpu_custom_call.1} parent=0
    _
  %s10 = ssub.s32 1, %s8
  %s11 = scalar_select 0, %s10, %s8
  loop: start=0, step=1, limit=4
  $region2: #{tpu_custom_call.1} parent=0 // loop_pre_header
    _
  $region3: #{tpu_custom_call.1} parent=0 // loop_header
    %s13 = sphi 0, %s17
    %p14 = scmp.ge.s32.totalorder %s13, 4
    %s23 = sphi 0, %s25
    %s26 = sphi 0, %s23
    %s27 = sphi 0, %s26
    %s43 = sphi 0, %s27
    %s47 = sphi 0, %s47
    %s49 = sphi 0, %s47
    %s50 = sphi 0, %s49
    %s64 = sphi 0, %s50
    %s68 = sphi 0, %s68
    %s70 = sphi 0, %s68
    %s71 = sphi 0, %s70
    %s85 = sphi 0, %s71
    %s89 = sphi 0, %s89
    %s91 = sphi 0, %s89
    %s92 = sphi 0, %s91
    %s106 = sphi 0, %s92
    %s110 = sphi 0, %s110
    %s112 = sphi 0, %s110
    %s113 = sphi 0, %s112
    %s127 = sphi 0, %s113
    %s131 = sphi 0, %s131
    %s133 = sphi 0, %s131
    %s134 = sphi 0, %s133
    %s148 = sphi 0, %s134
    %s152 = sphi 0, %s152
    %s154 = sphi 0, %s152
    %s155 = sphi 0, %s154
    %s169 = sphi 0, %s155
    %s175 = sphi 0, %s177
    %s178 = sphi 0, %s175
    %s179 = sphi 0, %s178
    %s195 = sphi 0, %s179
  $region4: #{tpu_custom_call.1} parent=0 // loop_header_branch
    %16 = sbr.rel (%p14) target = $region8
  $region5: #{tpu_custom_call.1} parent=0 // loop_body
    %s18 = ssub.s32 %s13, 1
    %s19 = ssub.s32 %s13, 2
    %s20 = sadd.s32 %s13, 1
    %s21 = ssub.s32 %s13, %s20
    %p22 = scmp.eq.s32.totalorder %s21, 0
    %s24 = sadd.s32 %s23, 1
    %s25 = scalar_select %p22, %s23, %s24
    %p28 = pneg %p22
    %p29 = scmp.eq.s32.totalorder %s13, 1
    %p30 = por %p28, %p29
    %p31 = scmp.ne.s32.totalorder %s23, %s26
    %p32 = scmp.eq.s32.totalorder %s13, 0
    %p33 = por %p31, %p32
    %p34 = scmp.ne.s32.totalorder %s23, %s26
    %p35 = scmp.eq.s32.totalorder %s18, 1
    %p36 = por %p34, %p35
    %p37 = scmp.ne.s32.totalorder %s26, %s27
    %p38 = scmp.eq.s32.totalorder %s18, 0
    %p39 = por %p37, %p38
    %p40 = scmp.ne.s32.totalorder %s26, %s27
    %p41 = scmp.eq.s32.totalorder %s19, 1
    %p42 = por %p40, %p41
    %p44 = scmp.ne.s32.totalorder %s27, %s43
    %p45 = scmp.eq.s32.totalorder %s19, 0
    %p46 = por %p44, %p45
    %s48 = sadd.s32 %s47, 1
    %p51 = scmp.eq.s32.totalorder %s13, 1
    %p52 = scmp.ne.s32.totalorder %s47, %s49
    %p53 = scmp.eq.s32.totalorder %s13, 0
    %p54 = por %p52, %p53
    %p55 = scmp.ne.s32.totalorder %s47, %s49
    %p56 = scmp.eq.s32.totalorder %s18, 1
    %p57 = por %p55, %p56
    %p58 = scmp.ne.s32.totalorder %s49, %s50
    %p59 = scmp.eq.s32.totalorder %s18, 0
    %p60 = por %p58, %p59
    %p61 = scmp.ne.s32.totalorder %s49, %s50
    %p62 = scmp.eq.s32.totalorder %s19, 1
    %p63 = por %p61, %p62
    %p65 = scmp.ne.s32.totalorder %s50, %s64
    %p66 = scmp.eq.s32.totalorder %s19, 0
    %p67 = por %p65, %p66
    %s69 = sadd.s32 %s68, 1
    %p72 = scmp.eq.s32.totalorder %s13, 1
    %p73 = scmp.ne.s32.totalorder %s68, %s70
    %p74 = scmp.eq.s32.totalorder %s13, 0
    %p75 = por %p73, %p74
    %p76 = scmp.ne.s32.totalorder %s68, %s70
    %p77 = scmp.eq.s32.totalorder %s18, 1
    %p78 = por %p76, %p77
    %p79 = scmp.ne.s32.totalorder %s70, %s71
    %p80 = scmp.eq.s32.totalorder %s18, 0
    %p81 = por %p79, %p80
    %p82 = scmp.ne.s32.totalorder %s70, %s71
    %p83 = scmp.eq.s32.totalorder %s19, 1
    %p84 = por %p82, %p83
    %p86 = scmp.ne.s32.totalorder %s71, %s85
    %p87 = scmp.eq.s32.totalorder %s19, 0
    %p88 = por %p86, %p87
    %s90 = sadd.s32 %s89, 1
    %p93 = scmp.eq.s32.totalorder %s13, 1
    %p94 = scmp.ne.s32.totalorder %s89, %s91
    %p95 = scmp.eq.s32.totalorder %s13, 0
    %p96 = por %p94, %p95
    %p97 = scmp.ne.s32.totalorder %s89, %s91
    %p98 = scmp.eq.s32.totalorder %s18, 1
    %p99 = por %p97, %p98
    %p100 = scmp.ne.s32.totalorder %s91, %s92
    %p101 = scmp.eq.s32.totalorder %s18, 0
    %p102 = por %p100, %p101
    %p103 = scmp.ne.s32.totalorder %s91, %s92
    %p104 = scmp.eq.s32.totalorder %s19, 1
    %p105 = por %p103, %p104
    %p107 = scmp.ne.s32.totalorder %s92, %s106
    %p108 = scmp.eq.s32.totalorder %s19, 0
    %p109 = por %p107, %p108
    %s111 = sadd.s32 %s110, 1
    %p114 = scmp.eq.s32.totalorder %s13, 1
    %p115 = scmp.ne.s32.totalorder %s110, %s112
    %p116 = scmp.eq.s32.totalorder %s13, 0
    %p117 = por %p115, %p116
    %p118 = scmp.ne.s32.totalorder %s110, %s112
    %p119 = scmp.eq.s32.totalorder %s18, 1
    %p120 = por %p118, %p119
    %p121 = scmp.ne.s32.totalorder %s112, %s113
    %p122 = scmp.eq.s32.totalorder %s18, 0
    %p123 = por %p121, %p122
    %p124 = scmp.ne.s32.totalorder %s112, %s113
    %p125 = scmp.eq.s32.totalorder %s19, 1
    %p126 = por %p124, %p125
    %p128 = scmp.ne.s32.totalorder %s113, %s127
    %p129 = scmp.eq.s32.totalorder %s19, 0
    %p130 = por %p128, %p129
    %s132 = sadd.s32 %s131, 1
    %p135 = scmp.eq.s32.totalorder %s13, 1
    %p136 = scmp.ne.s32.totalorder %s131, %s133
    %p137 = scmp.eq.s32.totalorder %s13, 0
    %p138 = por %p136, %p137
    %p139 = scmp.ne.s32.totalorder %s131, %s133
    %p140 = scmp.eq.s32.totalorder %s18, 1
    %p141 = por %p139, %p140
    %p142 = scmp.ne.s32.totalorder %s133, %s134
    %p143 = scmp.eq.s32.totalorder %s18, 0
    %p144 = por %p142, %p143
    %p145 = scmp.ne.s32.totalorder %s133, %s134
    %p146 = scmp.eq.s32.totalorder %s19, 1
    %p147 = por %p145, %p146
    %p149 = scmp.ne.s32.totalorder %s134, %s148
    %p150 = scmp.eq.s32.totalorder %s19, 0
    %p151 = por %p149, %p150
    %s153 = sadd.s32 %s152, 1
    %p156 = scmp.eq.s32.totalorder %s13, 1
    %p157 = scmp.ne.s32.totalorder %s152, %s154
    %p158 = scmp.eq.s32.totalorder %s13, 0
    %p159 = por %p157, %p158
    %p160 = scmp.ne.s32.totalorder %s152, %s154
    %p161 = scmp.eq.s32.totalorder %s18, 1
    %p162 = por %p160, %p161
    %p163 = scmp.ne.s32.totalorder %s154, %s155
    %p164 = scmp.eq.s32.totalorder %s18, 0
    %p165 = por %p163, %p164
    %p166 = scmp.ne.s32.totalorder %s154, %s155
    %p167 = scmp.eq.s32.totalorder %s19, 1
    %p168 = por %p166, %p167
    %p170 = scmp.ne.s32.totalorder %s155, %s169
    %p171 = scmp.eq.s32.totalorder %s19, 0
    %p172 = por %p170, %p171
    %s173 = ssub.s32 %s13, %s20
    %p174 = scmp.eq.s32.totalorder %s173, 0
    %s176 = sadd.s32 %s175, 1
    %s177 = scalar_select %p174, %s175, %s176
    %p180 = pneg %p174
    %p181 = scmp.eq.s32.totalorder %s13, 1
    %p182 = por %p180, %p181
    %p183 = scmp.ne.s32.totalorder %s175, %s178
    %p184 = scmp.eq.s32.totalorder %s13, 0
    %p185 = por %p183, %p184
    %p186 = scmp.ne.s32.totalorder %s175, %s178
    %p187 = scmp.eq.s32.totalorder %s18, 1
    %p188 = por %p186, %p187
    %p189 = scmp.ne.s32.totalorder %s178, %s179
    %p190 = scmp.eq.s32.totalorder %s18, 0
    %p191 = por %p189, %p190
    %p192 = scmp.ne.s32.totalorder %s178, %s179
    %p193 = scmp.eq.s32.totalorder %s19, 1
    %p194 = por %p192, %p193
    %p196 = scmp.ne.s32.totalorder %s179, %s195
    %p197 = scmp.eq.s32.totalorder %s19, 0
    %p198 = por %p196, %p197
    %p199 = scmp.le.s32.totalorder 1, %s13
    %p200 = scmp.lt.s32.totalorder %s13, 3
    %p201 = pnand %p199, %p200
    %p202 = pneg %p201
    // Predicated region
    $region9: #{tpu_custom_call.1} parent=5 // pred_check
      _
    $region10: #{tpu_custom_call.1} parent=5 // pred_check_branch
      %204 = sbr.rel (%p201) target = $region12
    $region11: #{tpu_custom_call.1} parent=5 // pred_region
      %s205 = ssub.s32 %s13, 1
      // Predicated region
      $region13: #{tpu_custom_call.1} parent=11 // pred_check
        %p206 = pneg %p60
      $region14: #{tpu_custom_call.1} parent=11 // pred_check_branch
        %208 = sbr.rel (%p206) target = $region16
      $region15: #{tpu_custom_call.1} parent=11 // pred_region
        _
      $region16: #{tpu_custom_call.1} parent=11 // pred_fallthru
        _
      // Predicated region
      $region17: #{tpu_custom_call.1} parent=11 // pred_check
        %p209 = pneg %p81
      $region18: #{tpu_custom_call.1} parent=11 // pred_check_branch
        %211 = sbr.rel (%p209) target = $region20
      $region19: #{tpu_custom_call.1} parent=11 // pred_region
        _
      $region20: #{tpu_custom_call.1} parent=11 // pred_fallthru
        _
      // Predicated region
      $region21: #{tpu_custom_call.1} parent=11 // pred_check
        %p212 = pneg %p102
      $region22: #{tpu_custom_call.1} parent=11 // pred_check_branch
        %214 = sbr.rel (%p212) target = $region24
      $region23: #{tpu_custom_call.1} parent=11 // pred_region
        _
      $region24: #{tpu_custom_call.1} parent=11 // pred_fallthru
        _
      // Predicated region
      $region25: #{tpu_custom_call.1} parent=11 // pred_check
        %p215 = pneg %p123
      $region26: #{tpu_custom_call.1} parent=11 // pred_check_branch
        %217 = sbr.rel (%p215) target = $region28
      $region27: #{tpu_custom_call.1} parent=11 // pred_region
        _
      $region28: #{tpu_custom_call.1} parent=11 // pred_fallthru
        _
      // Predicated region
      $region29: #{tpu_custom_call.1} parent=11 // pred_check
        %p218 = pneg %p144
      $region30: #{tpu_custom_call.1} parent=11 // pred_check_branch
        %220 = sbr.rel (%p218) target = $region32
      $region31: #{tpu_custom_call.1} parent=11 // pred_region
        _
      $region32: #{tpu_custom_call.1} parent=11 // pred_fallthru
        _
      // Predicated region
      $region33: #{tpu_custom_call.1} parent=11 // pred_check
        %p221 = pneg %p165
      $region34: #{tpu_custom_call.1} parent=11 // pred_check_branch
        %223 = sbr.rel (%p221) target = $region36
      $region35: #{tpu_custom_call.1} parent=11 // pred_region
        _
      $region36: #{tpu_custom_call.1} parent=11 // pred_fallthru
        _
    $region12: #{tpu_custom_call.1} parent=5 // pred_fallthru
      _
    %p224 = scmp.lt.s32.totalorder %s13, 2
    // Predicated region
    $region37: #{tpu_custom_call.1} parent=5 // pred_check
      %p225 = pneg %p224
    $region38: #{tpu_custom_call.1} parent=5 // pred_check_branch
      %227 = sbr.rel (%p225) target = $region40
    $region39: #{tpu_custom_call.1} parent=5 // pred_region
      // Predicated region
      $region41: #{tpu_custom_call.1} parent=39 // pred_check
        %p228 = pneg %p33
      $region42: #{tpu_custom_call.1} parent=39 // pred_check_branch
        %230 = sbr.rel (%p228) target = $region44
      $region43: #{tpu_custom_call.1} parent=39 // pred_region
        %s231 = smul.u32 8, %s13
        %p232 = scmp.lt.s32.totalorder %s231, 15
        %s233 = scalar_select %p232, %s231, 15
        %s234 = smul.addr %s233, 8
        %s235 = scalar_lea.vmem %s0, %s234
        %s236 = smul.u32 8, %s13
      $region44: #{tpu_custom_call.1} parent=39 // pred_fallthru
        _
    $region40: #{tpu_custom_call.1} parent=5 // pred_fallthru
      _
    %p237 = scmp.le.s32.totalorder 1, %s13
    %p238 = scmp.lt.s32.totalorder %s13, 3
    %p239 = pnand %p237, %p238
    %p240 = pneg %p239
    // Predicated region
    $region45: #{tpu_custom_call.1} parent=5 // pred_check
      _
    $region46: #{tpu_custom_call.1} parent=5 // pred_check_branch
      %242 = sbr.rel (%p239) target = $region48
    $region47: #{tpu_custom_call.1} parent=5 // pred_region
      %s243 = ssub.s32 %s13, 1
      %s244 = smul.u32 8, %s18
      %p245 = scmp.lt.s32.totalorder %s244, 15
      %s246 = scalar_select %p245, %s244, 15
      %s247 = smul.addr %s246, 8
      %s248 = scalar_lea.vmem %s0, %s247
      %p249 = pneg %p39
      %p250 = pneg %p36
      %p251 = pneg %p60
      %p252 = pneg %p57
      %p253 = pneg %p81
      %p254 = pneg %p78
      %p255 = pneg %p102
      %p256 = pneg %p99
      %p257 = pneg %p123
      %p258 = pneg %p120
      %p259 = pneg %p144
      %p260 = pneg %p141
      %p261 = pneg %p165
      %p262 = pneg %p162
      %p263 = pneg %p191
      %p264 = pneg %p188
      %s265 = smul.u32 8, %s18
      %p266 = scmp.lt.s32.totalorder %s265, 15
      %s267 = scalar_select %p266, %s265, 15
      %s268 = smul.addr %s267, 8
      %s269 = scalar_lea.vmem %s7, %s268
      %s270 = smul.u32 8, %s18
      %p271 = scmp.lt.s32.totalorder %s270, 15
      %s272 = scalar_select %p271, %s270, 15
      %s273 = smul.addr %s272, 8
      %s274 = scalar_lea.vmem %s0, %s273
      %s275 = smul.u32 8, %s18
      %s276 = smul.u32 8, %s18
      %p277 = scmp.lt.s32.totalorder %s276, 15
      %s278 = scalar_select %p277, %s276, 15
      %s279 = smul.addr %s278, 8
      %s280 = scalar_lea.vmem %s7, %s279
      %s281 = smul.u32 8, %s18
      %v283 = vld [vmem:[%s274] sm:$0xff]
      %v284 = vld [vmem:[%s274 + $0x8] sm:$0xff]
      %v285 = vld [vmem:[%s274 + $0x10] sm:$0xff]
      %v286 = vld [vmem:[%s274 + $0x18] sm:$0xff]
      %v287 = vld [vmem:[%s274 + $0x20] sm:$0xff]
      %v288 = vld [vmem:[%s274 + $0x28] sm:$0xff]
      %v289 = vld [vmem:[%s274 + $0x30] sm:$0xff]
      %v290 = vld [vmem:[%s274 + $0x38] sm:$0xff]
      %v291 = vpack.c.bf16 %v284, %v283
      %v292 = vpack.c.bf16 %v286, %v285
      %v293 = vpack.c.bf16 %v288, %v287
      %v294 = vpack.c.bf16 %v290, %v289
      %v295 = vld [vmem:[%s1] sm:$0xf]
      %v296 = vld [vmem:[%s1 + $0x4] sm:$0xf]
      %v297 = vld [vmem:[%s1 + $0x8] sm:$0xf]
      %v298 = vld [vmem:[%s1 + $0xc] sm:$0xf]
      %v299 = vld [vmem:[%s2] sm:$0x1]
      %v301 = vlaneseq
      %v302 = vshrl.u32 %v301, 7
      %v303 = vsub.s32 0, %v302
      %v304 = vrot.slane %v299, %v303
      %v310 = vunpack.c.l.b16 %v295
      %v311 = vunpack.c.l.b16 %v296
      %v312 = vunpack.c.l.b16 %v297
      %v313 = vunpack.c.l.b16 %v298
      %v314 = vpack.c.b16 %v311, %v310
      %v315 = vpack.c.b16 %v313, %v312
      %vm318 = vcmask 261120
      %v320 = vsel %vm318, %v291, 0
      %v323 = vsel %vm318, %v292, 0
      %v326 = vsel %vm318, %v293, 0
      %v329 = vsel %vm318, %v294, 0
      %331 = vmatprep.subr.bf16.mxu0 0
      %332 = vmatpush1.bf16.msra.mxu0 %v314
      %333 = vmatprep.subr.bf16.mxu0 0
      %334 = vmatpush1.bf16.msra.mxu0 %v315
      %335 = vmatprep.subr.bf16.mxu0 0
      %336 = vmatpush1.bf16.msra.mxu0 0
      %337 = vmatprep.subr.bf16.mxu0 0
      %338 = vmatpush1.bf16.msra.mxu0 0
      %339 = vmatprep.subr.bf16.mxu0 0
      %340 = vmatpush1.bf16.msra.mxu0 0
      %341 = vmatprep.subr.bf16.mxu0 0
      %342 = vmatpush1.bf16.msra.mxu0 0
      %343 = vmatprep.subr.bf16.mxu0 0
      %344 = vmatpush1.bf16.msra.mxu0 0
      %345 = vmatprep.subr.bf16.mxu0 0
      %346 = vmatpush1.bf16.msra.mxu0 0
      %347 = vmatprep.subr.bf16.mxu0 0
      %348 = vmatpush1.bf16.msra.mxu0 0
      %349 = vmatprep.subr.bf16.mxu0 0
      %350 = vmatpush1.bf16.msra.mxu0 0
      %351 = vmatprep.subr.bf16.mxu0 0
      %352 = vmatpush1.bf16.msra.mxu0 0
      %353 = vmatprep.subr.bf16.mxu0 0
      %354 = vmatpush1.bf16.msra.mxu0 0
      %355 = vmatprep.subr.bf16.mxu0 0
      %356 = vmatpush1.bf16.msra.mxu0 0
      %357 = vmatprep.subr.bf16.mxu0 0
      %358 = vmatpush1.bf16.msra.mxu0 0
      %359 = vmatprep.subr.bf16.mxu0 0
      %360 = vmatpush1.bf16.msra.mxu0 0
      %361 = vmatprep.subr.bf16.mxu0 0
      %362 = vmatpush1.bf16.msra.mxu0 0
      %363 = vmatprep.mubr.bf16.mxu0 0
      %364 = vmatmul.mubr.bf16.gmra.mrb[0].mxu0 %v320
      %v365 = vpop.f32.mrb[0].mxu0
      %v366 = vadd.f32 %v304, %v365
      %v367 = vpop.f32.mrb[0].mxu0
      %v368 = vpop.f32.mrb[0].mxu0
      %v369 = vadd.f32 %v304, %v368
      %v370 = vpop.f32.mrb[0].mxu0
      %371 = vmatprep.mubr.bf16.mxu0 0
      %372 = vmatmul.mubr.bf16.gmra.mrb[0].mxu0 %v323
      %v373 = vpop.f32.mrb[0].mxu0
      %v374 = vadd.f32 %v304, %v373
      %v375 = vpop.f32.mrb[0].mxu0
      %v376 = vpop.f32.mrb[0].mxu0
      %v377 = vadd.f32 %v304, %v376
      %v378 = vpop.f32.mrb[0].mxu0
      %379 = vmatprep.mubr.bf16.mxu0 0
      %380 = vmatmul.mubr.bf16.gmra.mrb[0].mxu0 %v326
      %v381 = vpop.f32.mrb[0].mxu0
      %v382 = vadd.f32 %v304, %v381
      %v383 = vpop.f32.mrb[0].mxu0
      %v384 = vpop.f32.mrb[0].mxu0
      %v385 = vadd.f32 %v304, %v384
      %v386 = vpop.f32.mrb[0].mxu0
      %387 = vmatprep.mubr.bf16.mxu0 0
      %388 = vmatmul.mubr.bf16.gmra.mrb[0].mxu0 %v329
      %v389 = vpop.f32.mrb[0].mxu0
      %v390 = vadd.f32 %v304, %v389
      %v391 = vpop.f32.mrb[0].mxu0
      %v392 = vpop.f32.mrb[0].mxu0
      %v393 = vadd.f32 %v304, %v392
      %v394 = vpop.f32.mrb[0].mxu0
      %395 = vdwg.mxu0
      %v396 = vmax.f32 %v366, 0.0
      %v397 = vmax.f32 %v369, 0.0
      %v398 = vmax.f32 %v374, 0.0
      %v399 = vmax.f32 %v377, 0.0
      %v400 = vmax.f32 %v382, 0.0
      %v401 = vmax.f32 %v385, 0.0
      %v402 = vmax.f32 %v390, 0.0
      %v403 = vmax.f32 %v393, 0.0
      %vm404 = vcmask 60416
      %405 = vst.msk [vmem:[#allocation2] sm:$0xf] %vm404, 0
      %vm406 = vcmask 57344
      %407 = vst.msk [vmem:[#allocation2 + $0x4] sm:$0x1] %vm406, 0
      %s408 = scalar_lea.vmem [#allocation2], 72
      %409 = vst.msk [vmem:[%s408] sm:$0xf] %vm404, 0
      %410 = vst.msk [vmem:[%s408 + $0x4] sm:$0x1] %vm406, 0
      %vm411 = vcmask 57344
      %vm412 = vsmask.f32 256
      %vm413 = vmand %vm411, %vm412
      %v414 = vld [vmem:[#allocation2] sm:$0x1]
      %v415 = vsel %vm413, 0, %v414
      %416 = vst [vmem:[#allocation2] sm:$0x1] %v415
      %v417 = vld [vmem:[#allocation2 + $0x8] sm:$0x1]
      %v418 = vsel %vm413, 0, %v417
      %419 = vst [vmem:[#allocation2 + $0x8] sm:$0x1] %v418
      %v420 = vld [vmem:[#allocation2 + $0x10] sm:$0x1]
      %v421 = vsel %vm413, 0, %v420
      %422 = vst [vmem:[#allocation2 + $0x10] sm:$0x1] %v421
      %v423 = vld [vmem:[#allocation2 + $0x18] sm:$0x1]
      %v424 = vsel %vm413, 0, %v423
      %425 = vst [vmem:[#allocation2 + $0x18] sm:$0x1] %v424
      %v426 = vld [vmem:[#allocation2 + $0x20] sm:$0x1]
      %v427 = vsel %vm413, 0, %v426
      %428 = vst [vmem:[#allocation2 + $0x20] sm:$0x1] %v427
      %v429 = vld [vmem:[#allocation2 + $0x28] sm:$0x1]
      %v430 = vsel %vm413, 0, %v429
      %431 = vst [vmem:[#allocation2 + $0x28] sm:$0x1] %v430
      %v432 = vld [vmem:[#allocation2 + $0x30] sm:$0x1]
      %v433 = vsel %vm413, 0, %v432
      %434 = vst [vmem:[#allocation2 + $0x30] sm:$0x1] %v433
      %v435 = vld [vmem:[#allocation2 + $0x38] sm:$0x1]
      %v436 = vsel %vm413, 0, %v435
      %437 = vst [vmem:[#allocation2 + $0x38] sm:$0x1] %v436
      %v438 = vld [vmem:[#allocation2 + $0x40] sm:$0x1]
      %v439 = vsel %vm413, 0, %v438
      %440 = vst [vmem:[#allocation2 + $0x40] sm:$0x1] %v439
      %v441 = vld [vmem:[#allocation2 + $0x48] sm:$0x1]
      %v442 = vsel %vm413, 0, %v441
      %443 = vst [vmem:[#allocation2 + $0x48] sm:$0x1] %v442
      %vm444 = vsmask.f32 7938
      %vm445 = vmand %vm411, %vm444
      %v446 = vld [vmem:[#allocation2 + $0x4] sm:$0x1]
      %v447 = vsel %vm445, 0, %v446
      %448 = vst [vmem:[#allocation2 + $0x4] sm:$0x1] %v447
      %v449 = vld [vmem:[#allocation2 + $0xc] sm:$0x1]
      %v450 = vsel %vm445, 0, %v449
      %451 = vst [vmem:[#allocation2 + $0xc] sm:$0x1] %v450
      %v452 = vld [vmem:[#allocation2 + $0x14] sm:$0x1]
      %v453 = vsel %vm445, 0, %v452
      %454 = vst [vmem:[#allocation2 + $0x14] sm:$0x1] %v453
      %v455 = vld [vmem:[#allocation2 + $0x1c] sm:$0x1]
      %v456 = vsel %vm445, 0, %v455
      %457 = vst [vmem:[#allocation2 + $0x1c] sm:$0x1] %v456
      %v458 = vld [vmem:[#allocation2 + $0x24] sm:$0x1]
      %v459 = vsel %vm445, 0, %v458
      %460 = vst [vmem:[#allocation2 + $0x24] sm:$0x1] %v459
      %v461 = vld [vmem:[#allocation2 + $0x2c] sm:$0x1]
      %v462 = vsel %vm445, 0, %v461
      %463 = vst [vmem:[#allocation2 + $0x2c] sm:$0x1] %v462
      %v464 = vld [vmem:[#allocation2 + $0x34] sm:$0x1]
      %v465 = vsel %vm445, 0, %v464
      %466 = vst [vmem:[#allocation2 + $0x34] sm:$0x1] %v465
      %v467 = vld [vmem:[#allocation2 + $0x3c] sm:$0x1]
      %v468 = vsel %vm445, 0, %v467
      %469 = vst [vmem:[#allocation2 + $0x3c] sm:$0x1] %v468
      %v470 = vld [vmem:[#allocation2 + $0x44] sm:$0x1]
      %v471 = vsel %vm445, 0, %v470
      %472 = vst [vmem:[#allocation2 + $0x44] sm:$0x1] %v471
      %v473 = vld [vmem:[#allocation2 + $0x4c] sm:$0x1]
      %v474 = vsel %vm445, 0, %v473
      %475 = vst [vmem:[#allocation2 + $0x4c] sm:$0x1] %v474
      %v476 = vpack.c.bf16 %v397, %v396
      %v477 = vpack.c.bf16 %v399, %v398
      %v478 = vpack.c.bf16 %v401, %v400
      %v479 = vpack.c.bf16 %v403, %v402
      %v484 = vunpack.c.l.b16 %v476
      %v485 = vunpack.c.h.b16 %v476
      %v486 = vunpack.c.l.b16 %v477
      %v487 = vunpack.c.h.b16 %v477
      %v488 = vunpack.c.l.b16 %v478
      %v489 = vunpack.c.h.b16 %v478
      %v490 = vunpack.c.l.b16 %v479
      %v491 = vunpack.c.h.b16 %v479
      %v492 = vpack.c.b16 %v484, %v484
      %v493 = vpack.c.b16 %v485, %v485
      %v494 = vpack.c.b16 %v486, %v486
      %v495 = vpack.c.b16 %v487, %v487
      %v496 = vpack.c.b16 %v488, %v488
      %v497 = vpack.c.b16 %v489, %v489
      %v498 = vpack.c.b16 %v490, %v490
      %v499 = vpack.c.b16 %v491, %v491
      %v501 = vshrl.u32 %v492, 16
      %v503 = vrot.slane %v501, 7
      %v504 = vshll.u32 %v492, 16
      %v506 = vor.u32 %v503, %v504
      %v507 = vrot.slane %v503, 4
      %v509 = vshrl.u32 %v493, 16
      %v511 = vrot.slane %v509, 7
      %v512 = vshll.u32 %v493, 16
      %v514 = vor.u32 %v511, %v512
      %v515 = vrot.slane %v511, 4
      %v517 = vshrl.u32 %v494, 16
      %v519 = vrot.slane %v517, 7
      %v520 = vshll.u32 %v494, 16
      %v522 = vor.u32 %v519, %v520
      %v523 = vrot.slane %v519, 4
      %v525 = vshrl.u32 %v495, 16
      %v527 = vrot.slane %v525, 7
      %v528 = vshll.u32 %v495, 16
      %v530 = vor.u32 %v527, %v528
      %v531 = vrot.slane %v527, 4
      %v533 = vshrl.u32 %v496, 16
      %v535 = vrot.slane %v533, 7
      %v536 = vshll.u32 %v496, 16
      %v538 = vor.u32 %v535, %v536
      %v539 = vrot.slane %v535, 4
      %v541 = vshrl.u32 %v497, 16
      %v543 = vrot.slane %v541, 7
      %v544 = vshll.u32 %v497, 16
      %v546 = vor.u32 %v543, %v544
      %v547 = vrot.slane %v543, 4
      %v549 = vshrl.u32 %v498, 16
      %v551 = vrot.slane %v549, 7
      %v552 = vshll.u32 %v498, 16
      %v554 = vor.u32 %v551, %v552
      %v555 = vrot.slane %v551, 4
      %v557 = vshrl.u32 %v499, 16
      %v559 = vrot.slane %v557, 7
      %v560 = vshll.u32 %v499, 16
      %v562 = vor.u32 %v559, %v560
      %v563 = vrot.slane %v559, 4
      %s580 = scalar_lea.vmem [#allocation2], 8
      %vm581 = vcmask 60416
      %vm582 = vmand %vm581, %vm444
      %v583 = vld [vmem:[%s580] sm:$0xf]
      %v584 = vsel %vm582, %v506, %v583
      %585 = vst [vmem:[%s580] sm:$0xf] %v584
      %v586 = vld [vmem:[%s580 + $0x4] sm:$0x1]
      %v587 = vsel %vm413, %v507, %v586
      %588 = vst [vmem:[%s580 + $0x4] sm:$0x1] %v587
      %v589 = vld [vmem:[%s580 + $0x8] sm:$0xf]
      %v590 = vsel %vm582, %v514, %v589
      %591 = vst [vmem:[%s580 + $0x8] sm:$0xf] %v590
      %v592 = vld [vmem:[%s580 + $0xc] sm:$0x1]
      %v593 = vsel %vm413, %v515, %v592
      %594 = vst [vmem:[%s580 + $0xc] sm:$0x1] %v593
      %v595 = vld [vmem:[%s580 + $0x10] sm:$0xf]
      %v596 = vsel %vm582, %v522, %v595
      %597 = vst [vmem:[%s580 + $0x10] sm:$0xf] %v596
      %v598 = vld [vmem:[%s580 + $0x14] sm:$0x1]
      %v599 = vsel %vm413, %v523, %v598
      %600 = vst [vmem:[%s580 + $0x14] sm:$0x1] %v599
      %v601 = vld [vmem:[%s580 + $0x18] sm:$0xf]
      %v602 = vsel %vm582, %v530, %v601
      %603 = vst [vmem:[%s580 + $0x18] sm:$0xf] %v602
      %v604 = vld [vmem:[%s580 + $0x1c] sm:$0x1]
      %v605 = vsel %vm413, %v531, %v604
      %606 = vst [vmem:[%s580 + $0x1c] sm:$0x1] %v605
      %v607 = vld [vmem:[%s580 + $0x20] sm:$0xf]
      %v608 = vsel %vm582, %v538, %v607
      %609 = vst [vmem:[%s580 + $0x20] sm:$0xf] %v608
      %v610 = vld [vmem:[%s580 + $0x24] sm:$0x1]
      %v611 = vsel %vm413, %v539, %v610
      %612 = vst [vmem:[%s580 + $0x24] sm:$0x1] %v611
      %v613 = vld [vmem:[%s580 + $0x28] sm:$0xf]
      %v614 = vsel %vm582, %v546, %v613
      %615 = vst [vmem:[%s580 + $0x28] sm:$0xf] %v614
      %v616 = vld [vmem:[%s580 + $0x2c] sm:$0x1]
      %v617 = vsel %vm413, %v547, %v616
      %618 = vst [vmem:[%s580 + $0x2c] sm:$0x1] %v617
      %v619 = vld [vmem:[%s580 + $0x30] sm:$0xf]
      %v620 = vsel %vm582, %v554, %v619
      %621 = vst [vmem:[%s580 + $0x30] sm:$0xf] %v620
      %v622 = vld [vmem:[%s580 + $0x34] sm:$0x1]
      %v623 = vsel %vm413, %v555, %v622
      %624 = vst [vmem:[%s580 + $0x34] sm:$0x1] %v623
      %v625 = vld [vmem:[%s580 + $0x38] sm:$0xf]
      %v626 = vsel %vm582, %v562, %v625
      %627 = vst [vmem:[%s580 + $0x38] sm:$0xf] %v626
      %v628 = vld [vmem:[%s580 + $0x3c] sm:$0x1]
      %v629 = vsel %vm413, %v563, %v628
      %630 = vst [vmem:[%s580 + $0x3c] sm:$0x1] %v629
      %v631 = vld [vmem:[#allocation2] sm:$0xf]
      %v632 = vld [vmem:[#allocation2 + $0x8] sm:$0xf]
      %v633 = vld [vmem:[#allocation2 + $0x10] sm:$0xf]
      %v634 = vld [vmem:[#allocation2 + $0x18] sm:$0xf]
      %v635 = vld [vmem:[#allocation2 + $0x20] sm:$0xf]
      %v636 = vld [vmem:[#allocation2 + $0x28] sm:$0xf]
      %v637 = vld [vmem:[#allocation2 + $0x30] sm:$0xf]
      %v638 = vld [vmem:[#allocation2 + $0x38] sm:$0xf]
      %v647 = vunpack.c.l.b16 %v631
      %v648 = vunpack.c.l.b16 %v632
      %v649 = vunpack.c.l.b16 %v633
      %v650 = vunpack.c.l.b16 %v634
      %v651 = vunpack.c.l.b16 %v635
      %v652 = vunpack.c.l.b16 %v636
      %v653 = vunpack.c.l.b16 %v637
      %v654 = vunpack.c.l.b16 %v638
      %v655 = vpack.c.b16 %v648, %v647
      %v656 = vpack.c.b16 %v650, %v649
      %v657 = vpack.c.b16 %v652, %v651
      %v658 = vpack.c.b16 %v654, %v653
      %vm663 = vcmask 64512
      %664 = vst.msk [vmem:[#allocation3] sm:$0xff] %vm663, %v655
      %665 = vst.msk [vmem:[#allocation3 + $0x8] sm:$0xff] %vm663, %v656
      %666 = vst.msk [vmem:[#allocation3 + $0x10] sm:$0xff] %vm663, %v657
      %667 = vst.msk [vmem:[#allocation3 + $0x18] sm:$0xff] %vm663, %v658
      %v668 = vld [vmem:[#allocation2] sm:$0xf]
      %v669 = vld [vmem:[#allocation2 + $0x4] sm:$0x1]
      %v670 = vld [vmem:[#allocation2 + $0x8] sm:$0xf]
      %v671 = vld [vmem:[#allocation2 + $0xc] sm:$0x1]
      %v672 = vld [vmem:[#allocation2 + $0x10] sm:$0xf]
      %v673 = vld [vmem:[#allocation2 + $0x14] sm:$0x1]
      %v674 = vld [vmem:[#allocation2 + $0x18] sm:$0xf]
      %v675 = vld [vmem:[#allocation2 + $0x1c] sm:$0x1]
      %v676 = vld [vmem:[#allocation2 + $0x20] sm:$0xf]
      %v677 = vld [vmem:[#allocation2 + $0x24] sm:$0x1]
      %v678 = vld [vmem:[#allocation2 + $0x28] sm:$0xf]
      %v679 = vld [vmem:[#allocation2 + $0x2c] sm:$0x1]
      %v680 = vld [vmem:[#allocation2 + $0x30] sm:$0xf]
      %v681 = vld [vmem:[#allocation2 + $0x34] sm:$0x1]
      %v682 = vld [vmem:[#allocation2 + $0x38] sm:$0xf]
      %v683 = vld [vmem:[#allocation2 + $0x3c] sm:$0x1]
      %vm684 = vsmask.f32 3328
      %vm685 = vsmask.f32 7440
      %vm686 = vmor %vm684, %vm685
      %v688 = vshrl.u32 %v668, 16
      %v690 = vrot.slane %v688, 4
      %v691 = vshll.u32 %v668, 16
      %v693 = vrot.slane %v691, 5
      %v694 = vor.u32 %v690, %v693
      %v695 = vrot.slane %v694, 4
      %v697 = vshll.u32 %v669, 16
      %v699 = vrot.slane %v697, 5
      %v700 = vsel %vm686, %v695, %v699
      %v702 = vshrl.u32 %v670, 16
      %v704 = vrot.slane %v702, 4
      %v705 = vshll.u32 %v670, 16
      %v707 = vrot.slane %v705, 5
      %v708 = vor.u32 %v704, %v707
      %v709 = vrot.slane %v708, 4
      %v711 = vshll.u32 %v671, 16
      %v713 = vrot.slane %v711, 5
      %v714 = vsel %vm686, %v709, %v713
      %v716 = vshrl.u32 %v672, 16
      %v718 = vrot.slane %v716, 4
      %v719 = vshll.u32 %v672, 16
      %v721 = vrot.slane %v719, 5
      %v722 = vor.u32 %v718, %v721
      %v723 = vrot.slane %v722, 4
      %v725 = vshll.u32 %v673, 16
      %v727 = vrot.slane %v725, 5
      %v728 = vsel %vm686, %v723, %v727
      %v730 = vshrl.u32 %v674, 16
      %v732 = vrot.slane %v730, 4
      %v733 = vshll.u32 %v674, 16
      %v735 = vrot.slane %v733, 5
      %v736 = vor.u32 %v732, %v735
      %v737 = vrot.slane %v736, 4
      %v739 = vshll.u32 %v675, 16
      %v741 = vrot.slane %v739, 5
      %v742 = vsel %vm686, %v737, %v741
      %v744 = vshrl.u32 %v676, 16
      %v746 = vrot.slane %v744, 4
      %v747 = vshll.u32 %v676, 16
      %v749 = vrot.slane %v747, 5
      %v750 = vor.u32 %v746, %v749
      %v751 = vrot.slane %v750, 4
      %v753 = vshll.u32 %v677, 16
      %v755 = vrot.slane %v753, 5
      %v756 = vsel %vm686, %v751, %v755
      %v758 = vshrl.u32 %v678, 16
      %v760 = vrot.slane %v758, 4
      %v761 = vshll.u32 %v678, 16
      %v763 = vrot.slane %v761, 5
      %v764 = vor.u32 %v760, %v763
      %v765 = vrot.slane %v764, 4
      %v767 = vshll.u32 %v679, 16
      %v769 = vrot.slane %v767, 5
      %v770 = vsel %vm686, %v765, %v769
      %v772 = vshrl.u32 %v680, 16
      %v774 = vrot.slane %v772, 4
      %v775 = vshll.u32 %v680, 16
      %v777 = vrot.slane %v775, 5
      %v778 = vor.u32 %v774, %v777
      %v779 = vrot.slane %v778, 4
      %v781 = vshll.u32 %v681, 16
      %v783 = vrot.slane %v781, 5
      %v784 = vsel %vm686, %v779, %v783
      %v786 = vshrl.u32 %v682, 16
      %v788 = vrot.slane %v786, 4
      %v789 = vshll.u32 %v682, 16
      %v791 = vrot.slane %v789, 5
      %v792 = vor.u32 %v788, %v791
      %v793 = vrot.slane %v792, 4
      %v795 = vshll.u32 %v683, 16
      %v797 = vrot.slane %v795, 5
      %v798 = vsel %vm686, %v793, %v797
      %v799 = vunpack.c.l.b16 %v700
      %v800 = vunpack.c.l.b16 %v714
      %v801 = vunpack.c.l.b16 %v728
      %v802 = vunpack.c.l.b16 %v742
      %v803 = vunpack.c.l.b16 %v756
      %v804 = vunpack.c.l.b16 %v770
      %v805 = vunpack.c.l.b16 %v784
      %v806 = vunpack.c.l.b16 %v798
      %v807 = vpack.c.b16 %v800, %v799
      %v808 = vpack.c.b16 %v802, %v801
      %v809 = vpack.c.b16 %v804, %v803
      %v810 = vpack.c.b16 %v806, %v805
      %811 = vrot.lane.b32.xlu0 %v807, 8
      %v812 = vpop.permute.xlu0 %811
      %813 = vrot.lane.b32.xlu0 %v808, 8
      %v814 = vpop.permute.xlu0 %813
      %815 = vrot.lane.b32.xlu0 %v809, 8
      %v816 = vpop.permute.xlu0 %815
      %817 = vrot.lane.b32.xlu0 %v810, 8
      %v818 = vpop.permute.xlu0 %817
      %vm823 = vcmask 130112
      %824 = vst.msk [vmem:[#allocation3] sm:$0xff] %vm823, %v812
      %825 = vst.msk [vmem:[#allocation3 + $0x8] sm:$0xff] %vm823, %v814
      %826 = vst.msk [vmem:[#allocation3 + $0x10] sm:$0xff] %vm823, %v816
      %827 = vst.msk [vmem:[#allocation3 + $0x18] sm:$0xff] %vm823, %v818
      %v828 = vld [vmem:[#allocation2] sm:$0xe]
      %v829 = vld [vmem:[#allocation2 + $0x4] sm:$0x1]
      %v830 = vld [vmem:[#allocation2 + $0x8] sm:$0xe]
      %v831 = vld [vmem:[#allocation2 + $0xc] sm:$0x1]
      %v832 = vld [vmem:[#allocation2 + $0x10] sm:$0xe]
      %v833 = vld [vmem:[#allocation2 + $0x14] sm:$0x1]
      %v834 = vld [vmem:[#allocation2 + $0x18] sm:$0xe]
      %v835 = vld [vmem:[#allocation2 + $0x1c] sm:$0x1]
      %v836 = vld [vmem:[#allocation2 + $0x20] sm:$0xe]
      %v837 = vld [vmem:[#allocation2 + $0x24] sm:$0x1]
      %v838 = vld [vmem:[#allocation2 + $0x28] sm:$0xe]
      %v839 = vld [vmem:[#allocation2 + $0x2c] sm:$0x1]
      %v840 = vld [vmem:[#allocation2 + $0x30] sm:$0xe]
      %v841 = vld [vmem:[#allocation2 + $0x34] sm:$0x1]
      %v842 = vld [vmem:[#allocation2 + $0x38] sm:$0xe]
      %v843 = vld [vmem:[#allocation2 + $0x3c] sm:$0x1]
      %vm860 = vcmask 1042432
      %vm861 = vcmask 1046532
      %vm862 = vmor %vm860, %vm861
      %v863 = vrot.slane %v828, 5
      %v864 = vrot.slane %v863, 4
      %v865 = vrot.slane %v829, 5
      %v866 = vsel %vm862, %v864, %v865
      %v867 = vrot.slane %v830, 5
      %v868 = vrot.slane %v867, 4
      %v869 = vrot.slane %v831, 5
      %v870 = vsel %vm862, %v868, %v869
      %v871 = vrot.slane %v832, 5
      %v872 = vrot.slane %v871, 4
      %v873 = vrot.slane %v833, 5
      %v874 = vsel %vm862, %v872, %v873
      %v875 = vrot.slane %v834, 5
      %v876 = vrot.slane %v875, 4
      %v877 = vrot.slane %v835, 5
      %v878 = vsel %vm862, %v876, %v877
      %v879 = vrot.slane %v836, 5
      %v880 = vrot.slane %v879, 4
      %v881 = vrot.slane %v837, 5
      %v882 = vsel %vm862, %v880, %v881
      %v883 = vrot.slane %v838, 5
      %v884 = vrot.slane %v883, 4
      %v885 = vrot.slane %v839, 5
      %v886 = vsel %vm862, %v884, %v885
      %v887 = vrot.slane %v840, 5
      %v888 = vrot.slane %v887, 4
      %v889 = vrot.slane %v841, 5
      %v890 = vsel %vm862, %v888, %v889
      %v891 = vrot.slane %v842, 5
      %v892 = vrot.slane %v891, 4
      %v893 = vrot.slane %v843, 5
      %v894 = vsel %vm862, %v892, %v893
      %v895 = vunpack.c.l.b16 %v866
      %v896 = vunpack.c.l.b16 %v870
      %v897 = vunpack.c.l.b16 %v874
      %v898 = vunpack.c.l.b16 %v878
      %v899 = vunpack.c.l.b16 %v882
      %v900 = vunpack.c.l.b16 %v886
      %v901 = vunpack.c.l.b16 %v890
      %v902 = vunpack.c.l.b16 %v894
      %v903 = vpack.c.b16 %v896, %v895
      %v904 = vpack.c.b16 %v898, %v897
      %v905 = vpack.c.b16 %v900, %v899
      %v906 = vpack.c.b16 %v902, %v901
      %907 = vrot.lane.b32.xlu0 %v903, 16
      %v908 = vpop.permute.xlu0 %907
      %909 = vrot.lane.b32.xlu0 %v904, 16
      %v910 = vpop.permute.xlu0 %909
      %911 = vrot.lane.b32.xlu0 %v905, 16
      %v912 = vpop.permute.xlu0 %911
      %913 = vrot.lane.b32.xlu0 %v906, 16
      %v914 = vpop.permute.xlu0 %913
      %vm919 = vcmask 195712
      %920 = vst.msk [vmem:[#allocation3] sm:$0xff] %vm919, %v908
      %921 = vst.msk [vmem:[#allocation3 + $0x8] sm:$0xff] %vm919, %v910
      %922 = vst.msk [vmem:[#allocation3 + $0x10] sm:$0xff] %vm919, %v912
      %923 = vst.msk [vmem:[#allocation3 + $0x18] sm:$0xff] %vm919, %v914
      %v924 = vld [vmem:[%s580] sm:$0xf]
      %v925 = vld [vmem:[%s580 + $0x8] sm:$0xf]
      %v926 = vld [vmem:[%s580 + $0x10] sm:$0xf]
      %v927 = vld [vmem:[%s580 + $0x18] sm:$0xf]
      %v928 = vld [vmem:[%s580 + $0x20] sm:$0xf]
      %v929 = vld [vmem:[%s580 + $0x28] sm:$0xf]
      %v930 = vld [vmem:[%s580 + $0x30] sm:$0xf]
      %v931 = vld [vmem:[%s580 + $0x38] sm:$0xf]
      %v940 = vunpack.c.l.b16 %v924
      %v941 = vunpack.c.l.b16 %v925
      %v942 = vunpack.c.l.b16 %v926
      %v943 = vunpack.c.l.b16 %v927
      %v944 = vunpack.c.l.b16 %v928
      %v945 = vunpack.c.l.b16 %v929
      %v946 = vunpack.c.l.b16 %v930
      %v947 = vunpack.c.l.b16 %v931
      %v948 = vpack.c.b16 %v941, %v940
      %v949 = vpack.c.b16 %v943, %v942
      %v950 = vpack.c.b16 %v945, %v944
      %v951 = vpack.c.b16 %v947, %v946
      %952 = vrot.lane.b32.xlu0 %v948, 24
      %v953 = vpop.permute.xlu0 %952
      %954 = vrot.lane.b32.xlu0 %v949, 24
      %v955 = vpop.permute.xlu0 %954
      %956 = vrot.lane.b32.xlu0 %v950, 24
      %v957 = vpop.permute.xlu0 %956
      %958 = vrot.lane.b32.xlu0 %v951, 24
      %v959 = vpop.permute.xlu0 %958
      %vm964 = vcmask 261312
      %965 = vst.msk [vmem:[#allocation3] sm:$0xff] %vm964, %v953
      %966 = vst.msk [vmem:[#allocation3 + $0x8] sm:$0xff] %vm964, %v955
      %967 = vst.msk [vmem:[#allocation3 + $0x10] sm:$0xff] %vm964, %v957
      %968 = vst.msk [vmem:[#allocation3 + $0x18] sm:$0xff] %vm964, %v959
      %v969 = vld [vmem:[%s580] sm:$0xf]
      %v970 = vld [vmem:[%s580 + $0x4] sm:$0x1]
      %v971 = vld [vmem:[%s580 + $0x8] sm:$0xf]
      %v972 = vld [vmem:[%s580 + $0xc] sm:$0x1]
      %v973 = vld [vmem:[%s580 + $0x10] sm:$0xf]
      %v974 = vld [vmem:[%s580 + $0x14] sm:$0x1]
      %v975 = vld [vmem:[%s580 + $0x18] sm:$0xf]
      %v976 = vld [vmem:[%s580 + $0x1c] sm:$0x1]
      %v977 = vld [vmem:[%s580 + $0x20] sm:$0xf]
      %v978 = vld [vmem:[%s580 + $0x24] sm:$0x1]
      %v979 = vld [vmem:[%s580 + $0x28] sm:$0xf]
      %v980 = vld [vmem:[%s580 + $0x2c] sm:$0x1]
      %v981 = vld [vmem:[%s580 + $0x30] sm:$0xf]
      %v982 = vld [vmem:[%s580 + $0x34] sm:$0x1]
      %v983 = vld [vmem:[%s580 + $0x38] sm:$0xf]
      %v984 = vld [vmem:[%s580 + $0x3c] sm:$0x1]
      %v986 = vshrl.u32 %v969, 16
      %v988 = vrot.slane %v986, 4
      %v989 = vshll.u32 %v969, 16
      %v991 = vrot.slane %v989, 5
      %v992 = vor.u32 %v988, %v991
      %v993 = vrot.slane %v992, 4
      %v995 = vshll.u32 %v970, 16
      %v997 = vrot.slane %v995, 5
      %v998 = vsel %vm686, %v993, %v997
      %v1000 = vshrl.u32 %v971, 16
      %v1002 = vrot.slane %v1000, 4
      %v1003 = vshll.u32 %v971, 16
      %v1005 = vrot.slane %v1003, 5
      %v1006 = vor.u32 %v1002, %v1005
      %v1007 = vrot.slane %v1006, 4
      %v1009 = vshll.u32 %v972, 16
      %v1011 = vrot.slane %v1009, 5
      %v1012 = vsel %vm686, %v1007, %v1011
      %v1014 = vshrl.u32 %v973, 16
      %v1016 = vrot.slane %v1014, 4
      %v1017 = vshll.u32 %v973, 16
      %v1019 = vrot.slane %v1017, 5
      %v1020 = vor.u32 %v1016, %v1019
      %v1021 = vrot.slane %v1020, 4
      %v1023 = vshll.u32 %v974, 16
      %v1025 = vrot.slane %v1023, 5
      %v1026 = vsel %vm686, %v1021, %v1025
      %v1028 = vshrl.u32 %v975, 16
      %v1030 = vrot.slane %v1028, 4
      %v1031 = vshll.u32 %v975, 16
      %v1033 = vrot.slane %v1031, 5
      %v1034 = vor.u32 %v1030, %v1033
      %v1035 = vrot.slane %v1034, 4
      %v1037 = vshll.u32 %v976, 16
      %v1039 = vrot.slane %v1037, 5
      %v1040 = vsel %vm686, %v1035, %v1039
      %v1042 = vshrl.u32 %v977, 16
      %v1044 = vrot.slane %v1042, 4
      %v1045 = vshll.u32 %v977, 16
      %v1047 = vrot.slane %v1045, 5
      %v1048 = vor.u32 %v1044, %v1047
      %v1049 = vrot.slane %v1048, 4
      %v1051 = vshll.u32 %v978, 16
      %v1053 = vrot.slane %v1051, 5
      %v1054 = vsel %vm686, %v1049, %v1053
      %v1056 = vshrl.u32 %v979, 16
      %v1058 = vrot.slane %v1056, 4
      %v1059 = vshll.u32 %v979, 16
      %v1061 = vrot.slane %v1059, 5
      %v1062 = vor.u32 %v1058, %v1061
      %v1063 = vrot.slane %v1062, 4
      %v1065 = vshll.u32 %v980, 16
      %v1067 = vrot.slane %v1065, 5
      %v1068 = vsel %vm686, %v1063, %v1067
      %v1070 = vshrl.u32 %v981, 16
      %v1072 = vrot.slane %v1070, 4
      %v1073 = vshll.u32 %v981, 16
      %v1075 = vrot.slane %v1073, 5
      %v1076 = vor.u32 %v1072, %v1075
      %v1077 = vrot.slane %v1076, 4
      %v1079 = vshll.u32 %v982, 16
      %v1081 = vrot.slane %v1079, 5
      %v1082 = vsel %vm686, %v1077, %v1081
      %v1084 = vshrl.u32 %v983, 16
      %v1086 = vrot.slane %v1084, 4
      %v1087 = vshll.u32 %v983, 16
      %v1089 = vrot.slane %v1087, 5
      %v1090 = vor.u32 %v1086, %v1089
      %v1091 = vrot.slane %v1090, 4
      %v1093 = vshll.u32 %v984, 16
      %v1095 = vrot.slane %v1093, 5
      %v1096 = vsel %vm686, %v1091, %v1095
      %v1097 = vunpack.c.l.b16 %v998
      %v1098 = vunpack.c.l.b16 %v1012
      %v1099 = vunpack.c.l.b16 %v1026
      %v1100 = vunpack.c.l.b16 %v1040
      %v1101 = vunpack.c.l.b16 %v1054
      %v1102 = vunpack.c.l.b16 %v1068
      %v1103 = vunpack.c.l.b16 %v1082
      %v1104 = vunpack.c.l.b16 %v1096
      %v1105 = vpack.c.b16 %v1098, %v1097
      %v1106 = vpack.c.b16 %v1100, %v1099
      %v1107 = vpack.c.b16 %v1102, %v1101
      %v1108 = vpack.c.b16 %v1104, %v1103
      %1109 = vrot.lane.b32.xlu0 %v1105, 32
      %v1110 = vpop.permute.xlu0 %1109
      %1111 = vrot.lane.b32.xlu0 %v1106, 32
      %v1112 = vpop.permute.xlu0 %1111
      %1113 = vrot.lane.b32.xlu0 %v1107, 32
      %v1114 = vpop.permute.xlu0 %1113
      %1115 = vrot.lane.b32.xlu0 %v1108, 32
      %v1116 = vpop.permute.xlu0 %1115
      %vm1121 = vcmask 326912
      %1122 = vst.msk [vmem:[#allocation3] sm:$0xff] %vm1121, %v1110
      %1123 = vst.msk [vmem:[#allocation3 + $0x8] sm:$0xff] %vm1121, %v1112
      %1124 = vst.msk [vmem:[#allocation3 + $0x10] sm:$0xff] %vm1121, %v1114
      %1125 = vst.msk [vmem:[#allocation3 + $0x18] sm:$0xff] %vm1121, %v1116
      %v1126 = vld [vmem:[%s580] sm:$0xe]
      %v1127 = vld [vmem:[%s580 + $0x4] sm:$0x1]
      %v1128 = vld [vmem:[%s580 + $0x8] sm:$0xe]
      %v1129 = vld [vmem:[%s580 + $0xc] sm:$0x1]
      %v1130 = vld [vmem:[%s580 + $0x10] sm:$0xe]
      %v1131 = vld [vmem:[%s580 + $0x14] sm:$0x1]
      %v1132 = vld [vmem:[%s580 + $0x18] sm:$0xe]
      %v1133 = vld [vmem:[%s580 + $0x1c] sm:$0x1]
      %v1134 = vld [vmem:[%s580 + $0x20] sm:$0xe]
      %v1135 = vld [vmem:[%s580 + $0x24] sm:$0x1]
      %v1136 = vld [vmem:[%s580 + $0x28] sm:$0xe]
      %v1137 = vld [vmem:[%s580 + $0x2c] sm:$0x1]
      %v1138 = vld [vmem:[%s580 + $0x30] sm:$0xe]
      %v1139 = vld [vmem:[%s580 + $0x34] sm:$0x1]
      %v1140 = vld [vmem:[%s580 + $0x38] sm:$0xe]
      %v1141 = vld [vmem:[%s580 + $0x3c] sm:$0x1]
      %v1158 = vrot.slane %v1126, 5
      %v1159 = vrot.slane %v1158, 4
      %v1160 = vrot.slane %v1127, 5
      %v1161 = vsel %vm862, %v1159, %v1160
      %v1162 = vrot.slane %v1128, 5
      %v1163 = vrot.slane %v1162, 4
      %v1164 = vrot.slane %v1129, 5
      %v1165 = vsel %vm862, %v1163, %v1164
      %v1166 = vrot.slane %v1130, 5
      %v1167 = vrot.slane %v1166, 4
      %v1168 = vrot.slane %v1131, 5
      %v1169 = vsel %vm862, %v1167, %v1168
      %v1170 = vrot.slane %v1132, 5
      %v1171 = vrot.slane %v1170, 4
      %v1172 = vrot.slane %v1133, 5
      %v1173 = vsel %vm862, %v1171, %v1172
      %v1174 = vrot.slane %v1134, 5
      %v1175 = vrot.slane %v1174, 4
      %v1176 = vrot.slane %v1135, 5
      %v1177 = vsel %vm862, %v1175, %v1176
      %v1178 = vrot.slane %v1136, 5
      %v1179 = vrot.slane %v1178, 4
      %v1180 = vrot.slane %v1137, 5
      %v1181 = vsel %vm862, %v1179, %v1180
      %v1182 = vrot.slane %v1138, 5
      %v1183 = vrot.slane %v1182, 4
      %v1184 = vrot.slane %v1139, 5
      %v1185 = vsel %vm862, %v1183, %v1184
      %v1186 = vrot.slane %v1140, 5
      %v1187 = vrot.slane %v1186, 4
      %v1188 = vrot.slane %v1141, 5
      %v1189 = vsel %vm862, %v1187, %v1188
      %v1190 = vunpack.c.l.b16 %v1161
      %v1191 = vunpack.c.l.b16 %v1165
      %v1192 = vunpack.c.l.b16 %v1169
      %v1193 = vunpack.c.l.b16 %v1173
      %v1194 = vunpack.c.l.b16 %v1177
      %v1195 = vunpack.c.l.b16 %v1181
      %v1196 = vunpack.c.l.b16 %v1185
      %v1197 = vunpack.c.l.b16 %v1189
      %v1198 = vpack.c.b16 %v1191, %v1190
      %v1199 = vpack.c.b16 %v1193, %v1192
      %v1200 = vpack.c.b16 %v1195, %v1194
      %v1201 = vpack.c.b16 %v1197, %v1196
      %1202 = vrot.lane.b32.xlu0 %v1198, 40
      %v1203 = vpop.permute.xlu0 %1202
      %1204 = vrot.lane.b32.xlu0 %v1199, 40
      %v1205 = vpop.permute.xlu0 %1204
      %1206 = vrot.lane.b32.xlu0 %v1200, 40
      %v1207 = vpop.permute.xlu0 %1206
      %1208 = vrot.lane.b32.xlu0 %v1201, 40
      %v1209 = vpop.permute.xlu0 %1208
      %vm1214 = vcmask 392512
      %1215 = vst.msk [vmem:[#allocation3] sm:$0xff] %vm1214, %v1203
      %1216 = vst.msk [vmem:[#allocation3 + $0x8] sm:$0xff] %vm1214, %v1205
      %1217 = vst.msk [vmem:[#allocation3 + $0x10] sm:$0xff] %vm1214, %v1207
      %1218 = vst.msk [vmem:[#allocation3 + $0x18] sm:$0xff] %vm1214, %v1209
      %s1219 = scalar_lea.vmem [#allocation2], 16
      %v1220 = vld [vmem:[%s1219] sm:$0xf]
      %v1221 = vld [vmem:[%s1219 + $0x8] sm:$0xf]
      %v1222 = vld [vmem:[%s1219 + $0x10] sm:$0xf]
      %v1223 = vld [vmem:[%s1219 + $0x18] sm:$0xf]
      %v1224 = vld [vmem:[%s1219 + $0x20] sm:$0xf]
      %v1225 = vld [vmem:[%s1219 + $0x28] sm:$0xf]
      %v1226 = vld [vmem:[%s1219 + $0x30] sm:$0xf]
      %v1227 = vld [vmem:[%s1219 + $0x38] sm:$0xf]
      %v1236 = vunpack.c.l.b16 %v1220
      %v1237 = vunpack.c.l.b16 %v1221
      %v1238 = vunpack.c.l.b16 %v1222
      %v1239 = vunpack.c.l.b16 %v1223
      %v1240 = vunpack.c.l.b16 %v1224
      %v1241 = vunpack.c.l.b16 %v1225
      %v1242 = vunpack.c.l.b16 %v1226
      %v1243 = vunpack.c.l.b16 %v1227
      %v1244 = vpack.c.b16 %v1237, %v1236
      %v1245 = vpack.c.b16 %v1239, %v1238
      %v1246 = vpack.c.b16 %v1241, %v1240
      %v1247 = vpack.c.b16 %v1243, %v1242
      %1248 = vrot.lane.b32.xlu0 %v1244, 48
      %v1249 = vpop.permute.xlu0 %1248
      %1250 = vrot.lane.b32.xlu0 %v1245, 48
      %v1251 = vpop.permute.xlu0 %1250
      %1252 = vrot.lane.b32.xlu0 %v1246, 48
      %v1253 = vpop.permute.xlu0 %1252
      %1254 = vrot.lane.b32.xlu0 %v1247, 48
      %v1255 = vpop.permute.xlu0 %1254
      %vm1260 = vcmask 458112
      %1261 = vst.msk [vmem:[#allocation3] sm:$0xff] %vm1260, %v1249
      %1262 = vst.msk [vmem:[#allocation3 + $0x8] sm:$0xff] %vm1260, %v1251
      %1263 = vst.msk [vmem:[#allocation3 + $0x10] sm:$0xff] %vm1260, %v1253
      %1264 = vst.msk [vmem:[#allocation3 + $0x18] sm:$0xff] %vm1260, %v1255
      %v1265 = vld [vmem:[%s1219] sm:$0xf]
      %v1266 = vld [vmem:[%s1219 + $0x4] sm:$0x1]
      %v1267 = vld [vmem:[%s1219 + $0x8] sm:$0xf]
      %v1268 = vld [vmem:[%s1219 + $0xc] sm:$0x1]
      %v1269 = vld [vmem:[%s1219 + $0x10] sm:$0xf]
      %v1270 = vld [vmem:[%s1219 + $0x14] sm:$0x1]
      %v1271 = vld [vmem:[%s1219 + $0x18] sm:$0xf]
      %v1272 = vld [vmem:[%s1219 + $0x1c] sm:$0x1]
      %v1273 = vld [vmem:[%s1219 + $0x20] sm:$0xf]
      %v1274 = vld [vmem:[%s1219 + $0x24] sm:$0x1]
      %v1275 = vld [vmem:[%s1219 + $0x28] sm:$0xf]
      %v1276 = vld [vmem:[%s1219 + $0x2c] sm:$0x1]
      %v1277 = vld [vmem:[%s1219 + $0x30] sm:$0xf]
      %v1278 = vld [vmem:[%s1219 + $0x34] sm:$0x1]
      %v1279 = vld [vmem:[%s1219 + $0x38] sm:$0xf]
      %v1280 = vld [vmem:[%s1219 + $0x3c] sm:$0x1]
      %v1282 = vshrl.u32 %v1265, 16
      %v1284 = vrot.slane %v1282, 4
      %v1285 = vshll.u32 %v1265, 16
      %v1287 = vrot.slane %v1285, 5
      %v1288 = vor.u32 %v1284, %v1287
      %v1289 = vrot.slane %v1288, 4
      %v1291 = vshll.u32 %v1266, 16
      %v1293 = vrot.slane %v1291, 5
      %v1294 = vsel %vm686, %v1289, %v1293
      %v1296 = vshrl.u32 %v1267, 16
      %v1298 = vrot.slane %v1296, 4
      %v1299 = vshll.u32 %v1267, 16
      %v1301 = vrot.slane %v1299, 5
      %v1302 = vor.u32 %v1298, %v1301
      %v1303 = vrot.slane %v1302, 4
      %v1305 = vshll.u32 %v1268, 16
      %v1307 = vrot.slane %v1305, 5
      %v1308 = vsel %vm686, %v1303, %v1307
      %v1310 = vshrl.u32 %v1269, 16
      %v1312 = vrot.slane %v1310, 4
      %v1313 = vshll.u32 %v1269, 16
      %v1315 = vrot.slane %v1313, 5
      %v1316 = vor.u32 %v1312, %v1315
      %v1317 = vrot.slane %v1316, 4
      %v1319 = vshll.u32 %v1270, 16
      %v1321 = vrot.slane %v1319, 5
      %v1322 = vsel %vm686, %v1317, %v1321
      %v1324 = vshrl.u32 %v1271, 16
      %v1326 = vrot.slane %v1324, 4
      %v1327 = vshll.u32 %v1271, 16
      %v1329 = vrot.slane %v1327, 5
      %v1330 = vor.u32 %v1326, %v1329
      %v1331 = vrot.slane %v1330, 4
      %v1333 = vshll.u32 %v1272, 16
      %v1335 = vrot.slane %v1333, 5
      %v1336 = vsel %vm686, %v1331, %v1335
      %v1338 = vshrl.u32 %v1273, 16
      %v1340 = vrot.slane %v1338, 4
      %v1341 = vshll.u32 %v1273, 16
      %v1343 = vrot.slane %v1341, 5
      %v1344 = vor.u32 %v1340, %v1343
      %v1345 = vrot.slane %v1344, 4
      %v1347 = vshll.u32 %v1274, 16
      %v1349 = vrot.slane %v1347, 5
      %v1350 = vsel %vm686, %v1345, %v1349
      %v1352 = vshrl.u32 %v1275, 16
      %v1354 = vrot.slane %v1352, 4
      %v1355 = vshll.u32 %v1275, 16
      %v1357 = vrot.slane %v1355, 5
      %v1358 = vor.u32 %v1354, %v1357
      %v1359 = vrot.slane %v1358, 4
      %v1361 = vshll.u32 %v1276, 16
      %v1363 = vrot.slane %v1361, 5
      %v1364 = vsel %vm686, %v1359, %v1363
      %v1366 = vshrl.u32 %v1277, 16
      %v1368 = vrot.slane %v1366, 4
      %v1369 = vshll.u32 %v1277, 16
      %v1371 = vrot.slane %v1369, 5
      %v1372 = vor.u32 %v1368, %v1371
      %v1373 = vrot.slane %v1372, 4
      %v1375 = vshll.u32 %v1278, 16
      %v1377 = vrot.slane %v1375, 5
      %v1378 = vsel %vm686, %v1373, %v1377
      %v1380 = vshrl.u32 %v1279, 16
      %v1382 = vrot.slane %v1380, 4
      %v1383 = vshll.u32 %v1279, 16
      %v1385 = vrot.slane %v1383, 5
      %v1386 = vor.u32 %v1382, %v1385
      %v1387 = vrot.slane %v1386, 4
      %v1389 = vshll.u32 %v1280, 16
      %v1391 = vrot.slane %v1389, 5
      %v1392 = vsel %vm686, %v1387, %v1391
      %v1393 = vunpack.c.l.b16 %v1294
      %v1394 = vunpack.c.l.b16 %v1308
      %v1395 = vunpack.c.l.b16 %v1322
      %v1396 = vunpack.c.l.b16 %v1336
      %v1397 = vunpack.c.l.b16 %v1350
      %v1398 = vunpack.c.l.b16 %v1364
      %v1399 = vunpack.c.l.b16 %v1378
      %v1400 = vunpack.c.l.b16 %v1392
      %v1401 = vpack.c.b16 %v1394, %v1393
      %v1402 = vpack.c.b16 %v1396, %v1395
      %v1403 = vpack.c.b16 %v1398, %v1397
      %v1404 = vpack.c.b16 %v1400, %v1399
      %1405 = vrot.lane.b32.xlu0 %v1401, 56
      %v1406 = vpop.permute.xlu0 %1405
      %1407 = vrot.lane.b32.xlu0 %v1402, 56
      %v1408 = vpop.permute.xlu0 %1407
      %1409 = vrot.lane.b32.xlu0 %v1403, 56
      %v1410 = vpop.permute.xlu0 %1409
      %1411 = vrot.lane.b32.xlu0 %v1404, 56
      %v1412 = vpop.permute.xlu0 %1411
      %vm1417 = vcmask 523712
      %1418 = vst.msk [vmem:[#allocation3] sm:$0xff] %vm1417, %v1406
      %1419 = vst.msk [vmem:[#allocation3 + $0x8] sm:$0xff] %vm1417, %v1408
      %1420 = vst.msk [vmem:[#allocation3 + $0x10] sm:$0xff] %vm1417, %v1410
      %1421 = vst.msk [vmem:[#allocation3 + $0x18] sm:$0xff] %vm1417, %v1412
      %v1422 = vld [vmem:[%s1219] sm:$0xe]
      %v1423 = vld [vmem:[%s1219 + $0x4] sm:$0x1]
      %v1424 = vld [vmem:[%s1219 + $0x8] sm:$0xe]
      %v1425 = vld [vmem:[%s1219 + $0xc] sm:$0x1]
      %v1426 = vld [vmem:[%s1219 + $0x10] sm:$0xe]
      %v1427 = vld [vmem:[%s1219 + $0x14] sm:$0x1]
      %v1428 = vld [vmem:[%s1219 + $0x18] sm:$0xe]
      %v1429 = vld [vmem:[%s1219 + $0x1c] sm:$0x1]
      %v1430 = vld [vmem:[%s1219 + $0x20] sm:$0xe]
      %v1431 = vld [vmem:[%s1219 + $0x24] sm:$0x1]
      %v1432 = vld [vmem:[%s1219 + $0x28] sm:$0xe]
      %v1433 = vld [vmem:[%s1219 + $0x2c] sm:$0x1]
      %v1434 = vld [vmem:[%s1219 + $0x30] sm:$0xe]
      %v1435 = vld [vmem:[%s1219 + $0x34] sm:$0x1]
      %v1436 = vld [vmem:[%s1219 + $0x38] sm:$0xe]
      %v1437 = vld [vmem:[%s1219 + $0x3c] sm:$0x1]
      %v1454 = vrot.slane %v1422, 5
      %v1455 = vrot.slane %v1454, 4
      %v1456 = vrot.slane %v1423, 5
      %v1457 = vsel %vm862, %v1455, %v1456
      %v1458 = vrot.slane %v1424, 5
      %v1459 = vrot.slane %v1458, 4
      %v1460 = vrot.slane %v1425, 5
      %v1461 = vsel %vm862, %v1459, %v1460
      %v1462 = vrot.slane %v1426, 5
      %v1463 = vrot.slane %v1462, 4
      %v1464 = vrot.slane %v1427, 5
      %v1465 = vsel %vm862, %v1463, %v1464
      %v1466 = vrot.slane %v1428, 5
      %v1467 = vrot.slane %v1466, 4
      %v1468 = vrot.slane %v1429, 5
      %v1469 = vsel %vm862, %v1467, %v1468
      %v1470 = vrot.slane %v1430, 5
      %v1471 = vrot.slane %v1470, 4
      %v1472 = vrot.slane %v1431, 5
      %v1473 = vsel %vm862, %v1471, %v1472
      %v1474 = vrot.slane %v1432, 5
      %v1475 = vrot.slane %v1474, 4
      %v1476 = vrot.slane %v1433, 5
      %v1477 = vsel %vm862, %v1475, %v1476
      %v1478 = vrot.slane %v1434, 5
      %v1479 = vrot.slane %v1478, 4
      %v1480 = vrot.slane %v1435, 5
      %v1481 = vsel %vm862, %v1479, %v1480
      %v1482 = vrot.slane %v1436, 5
      %v1483 = vrot.slane %v1482, 4
      %v1484 = vrot.slane %v1437, 5
      %v1485 = vsel %vm862, %v1483, %v1484
      %v1486 = vunpack.c.l.b16 %v1457
      %v1487 = vunpack.c.l.b16 %v1461
      %v1488 = vunpack.c.l.b16 %v1465
      %v1489 = vunpack.c.l.b16 %v1469
      %v1490 = vunpack.c.l.b16 %v1473
      %v1491 = vunpack.c.l.b16 %v1477
      %v1492 = vunpack.c.l.b16 %v1481
      %v1493 = vunpack.c.l.b16 %v1485
      %v1494 = vpack.c.b16 %v1487, %v1486
      %v1495 = vpack.c.b16 %v1489, %v1488
      %v1496 = vpack.c.b16 %v1491, %v1490
      %v1497 = vpack.c.b16 %v1493, %v1492
      %1498 = vrot.lane.b32.xlu0 %v1494, 64
      %v1499 = vpop.permute.xlu0 %1498
      %1500 = vrot.lane.b32.xlu0 %v1495, 64
      %v1501 = vpop.permute.xlu0 %1500
      %1502 = vrot.lane.b32.xlu0 %v1496, 64
      %v1503 = vpop.permute.xlu0 %1502
      %1504 = vrot.lane.b32.xlu0 %v1497, 64
      %v1505 = vpop.permute.xlu0 %1504
      %vm1510 = vcmask 589312
      %1511 = vst.msk [vmem:[#allocation3] sm:$0xff] %vm1510, %v1499
      %1512 = vst.msk [vmem:[#allocation3 + $0x8] sm:$0xff] %vm1510, %v1501
      %1513 = vst.msk [vmem:[#allocation3 + $0x10] sm:$0xff] %vm1510, %v1503
      %1514 = vst.msk [vmem:[#allocation3 + $0x18] sm:$0xff] %vm1510, %v1505
      %v1515 = vld [vmem:[#allocation3] sm:$0xff]
      %v1516 = vld [vmem:[#allocation3 + $0x8] sm:$0xff]
      %v1517 = vld [vmem:[#allocation3 + $0x10] sm:$0xff]
      %v1518 = vld [vmem:[#allocation3 + $0x18] sm:$0xff]
      %v1519 = vld [vmem:[%s3] sm:$0xf]
      %v1520 = vld [vmem:[%s3 + $0x4] sm:$0xf]
      %v1521 = vld [vmem:[%s3 + $0x8] sm:$0xf]
      %v1522 = vld [vmem:[%s3 + $0xc] sm:$0xf]
      %v1523 = vld [vmem:[%s3 + $0x10] sm:$0xf]
      %v1524 = vld [vmem:[%s3 + $0x14] sm:$0xf]
      %v1525 = vld [vmem:[%s3 + $0x18] sm:$0xf]
      %v1526 = vld [vmem:[%s3 + $0x1c] sm:$0xf]
      %v1527 = vld [vmem:[%s3 + $0x20] sm:$0xf]
      %v1528 = vld [vmem:[%s4] sm:$0x1]
      %v1530 = vlaneseq
      %v1531 = vshrl.u32 %v1530, 7
      %v1532 = vsub.s32 0, %v1531
      %v1533 = vrot.slane %v1528, %v1532
      %v1544 = vunpack.c.l.b16 %v1519
      %v1545 = vunpack.c.l.b16 %v1520
      %v1546 = vunpack.c.l.b16 %v1521
      %v1547 = vunpack.c.l.b16 %v1522
      %v1548 = vunpack.c.l.b16 %v1523
      %v1549 = vunpack.c.l.b16 %v1524
      %v1550 = vunpack.c.l.b16 %v1525
      %v1551 = vunpack.c.l.b16 %v1526
      %v1552 = vunpack.c.l.b16 %v1527
      %v1553 = vpack.c.b16 %v1545, %v1544
      %v1554 = vpack.c.b16 %v1547, %v1546
      %v1555 = vpack.c.b16 %v1549, %v1548
      %v1556 = vpack.c.b16 %v1551, %v1550
      %v1557 = vpack.c.b16 %v1552, %v1552
      %vm1562 = vcmask 588800
      %v1564 = vsel %vm1562, %v1515, 0
      %v1567 = vsel %vm1562, %v1516, 0
      %v1570 = vsel %vm1562, %v1517, 0
      %v1573 = vsel %vm1562, %v1518, 0
      %vm1575 = vcmask 1043456
      %v1577 = vsel %vm1575, %v1557, 0
      %1579 = vmatprep.subr.bf16.mxu0 0
      %1580 = vmatpush1.bf16.msra.mxu0 %v1553
      %1581 = vmatprep.subr.bf16.mxu0 0
      %1582 = vmatpush1.bf16.msra.mxu0 %v1554
      %1583 = vmatprep.subr.bf16.mxu0 0
      %1584 = vmatpush1.bf16.msra.mxu0 %v1555
      %1585 = vmatprep.subr.bf16.mxu0 0
      %1586 = vmatpush1.bf16.msra.mxu0 %v1556
      %1587 = vmatprep.subr.bf16.mxu0 0
      %1588 = vmatpush1.bf16.msra.mxu0 %v1577
      %1589 = vmatprep.subr.bf16.mxu0 0
      %1590 = vmatpush1.bf16.msra.mxu0 0
      %1591 = vmatprep.subr.bf16.mxu0 0
      %1592 = vmatpush1.bf16.msra.mxu0 0
      %1593 = vmatprep.subr.bf16.mxu0 0
      %1594 = vmatpush1.bf16.msra.mxu0 0
      %1595 = vmatprep.subr.bf16.mxu0 0
      %1596 = vmatpush1.bf16.msra.mxu0 0
      %1597 = vmatprep.subr.bf16.mxu0 0
      %1598 = vmatpush1.bf16.msra.mxu0 0
      %1599 = vmatprep.subr.bf16.mxu0 0
      %1600 = vmatpush1.bf16.msra.mxu0 0
      %1601 = vmatprep.subr.bf16.mxu0 0
      %1602 = vmatpush1.bf16.msra.mxu0 0
      %1603 = vmatprep.subr.bf16.mxu0 0
      %1604 = vmatpush1.bf16.msra.mxu0 0
      %1605 = vmatprep.subr.bf16.mxu0 0
      %1606 = vmatpush1.bf16.msra.mxu0 0
      %1607 = vmatprep.subr.bf16.mxu0 0
      %1608 = vmatpush1.bf16.msra.mxu0 0
      %1609 = vmatprep.subr.bf16.mxu0 0
      %1610 = vmatpush1.bf16.msra.mxu0 0
      %1611 = vmatprep.mubr.bf16.mxu0 0
      %1612 = vmatmul.mubr.bf16.gmra.mrb[0].mxu0 %v1564
      %v1613 = vpop.f32.mrb[0].mxu0
      %v1614 = vadd.f32 %v1533, %v1613
      %v1615 = vpop.f32.mrb[0].mxu0
      %v1616 = vpop.f32.mrb[0].mxu0
      %v1617 = vadd.f32 %v1533, %v1616
      %v1618 = vpop.f32.mrb[0].mxu0
      %1619 = vmatprep.mubr.bf16.mxu0 0
      %1620 = vmatmul.mubr.bf16.gmra.mrb[0].mxu0 %v1567
      %v1621 = vpop.f32.mrb[0].mxu0
      %v1622 = vadd.f32 %v1533, %v1621
      %v1623 = vpop.f32.mrb[0].mxu0
      %v1624 = vpop.f32.mrb[0].mxu0
      %v1625 = vadd.f32 %v1533, %v1624
      %v1626 = vpop.f32.mrb[0].mxu0
      %1627 = vmatprep.mubr.bf16.mxu0 0
      %1628 = vmatmul.mubr.bf16.gmra.mrb[0].mxu0 %v1570
      %v1629 = vpop.f32.mrb[0].mxu0
      %v1630 = vadd.f32 %v1533, %v1629
      %v1631 = vpop.f32.mrb[0].mxu0
      %v1632 = vpop.f32.mrb[0].mxu0
      %v1633 = vadd.f32 %v1533, %v1632
      %v1634 = vpop.f32.mrb[0].mxu0
      %1635 = vmatprep.mubr.bf16.mxu0 0
      %1636 = vmatmul.mubr.bf16.gmra.mrb[0].mxu0 %v1573
      %v1637 = vpop.f32.mrb[0].mxu0
      %v1638 = vadd.f32 %v1533, %v1637
      %v1639 = vpop.f32.mrb[0].mxu0
      %v1640 = vpop.f32.mrb[0].mxu0
      %v1641 = vadd.f32 %v1533, %v1640
      %v1642 = vpop.f32.mrb[0].mxu0
      %1643 = vdwg.mxu0
      %v1644 = vmax.f32 %v1614, 0.0
      %v1645 = vmax.f32 %v1617, 0.0
      %v1646 = vmax.f32 %v1622, 0.0
      %v1647 = vmax.f32 %v1625, 0.0
      %v1648 = vmax.f32 %v1630, 0.0
      %v1649 = vmax.f32 %v1633, 0.0
      %v1650 = vmax.f32 %v1638, 0.0
      %v1651 = vmax.f32 %v1641, 0.0
      %v1652 = vpack.c.bf16 %v1645, %v1644
      %v1653 = vpack.c.bf16 %v1647, %v1646
      %v1654 = vpack.c.bf16 %v1649, %v1648
      %v1655 = vpack.c.bf16 %v1651, %v1650
      %v1656 = vld [vmem:[%s5] sm:$0xf]
      %v1657 = vld [vmem:[%s6] sm:$0x1]
      %v1659 = vlaneseq
      %v1660 = vshrl.u32 %v1659, 7
      %v1661 = vsub.s32 0, %v1660
      %v1662 = vrot.slane %v1657, %v1661
      %v1665 = vsel %vm663, %v1652, 0
      %v1668 = vsel %vm663, %v1653, 0
      %v1671 = vsel %vm663, %v1654, 0
      %v1674 = vsel %vm663, %v1655, 0
      %v1677 = vsel %vm1575, %v1656, 0
      %1679 = vmatprep.subr.bf16.mxu0 0
      %1680 = vmatpush1.bf16.msra.mxu0 %v1677
      %1681 = vmatprep.subr.bf16.mxu0 0
      %1682 = vmatpush1.bf16.msra.mxu0 0
      %1683 = vmatprep.subr.bf16.mxu0 0
      %1684 = vmatpush1.bf16.msra.mxu0 0
      %1685 = vmatprep.subr.bf16.mxu0 0
      %1686 = vmatpush1.bf16.msra.mxu0 0
      %1687 = vmatprep.subr.bf16.mxu0 0
      %1688 = vmatpush1.bf16.msra.mxu0 0
      %1689 = vmatprep.subr.bf16.mxu0 0
      %1690 = vmatpush1.bf16.msra.mxu0 0
      %1691 = vmatprep.subr.bf16.mxu0 0
      %1692 = vmatpush1.bf16.msra.mxu0 0
      %1693 = vmatprep.subr.bf16.mxu0 0
      %1694 = vmatpush1.bf16.msra.mxu0 0
      %1695 = vmatprep.subr.bf16.mxu0 0
      %1696 = vmatpush1.bf16.msra.mxu0 0
      %1697 = vmatprep.subr.bf16.mxu0 0
      %1698 = vmatpush1.bf16.msra.mxu0 0
      %1699 = vmatprep.subr.bf16.mxu0 0
      %1700 = vmatpush1.bf16.msra.mxu0 0
      %1701 = vmatprep.subr.bf16.mxu0 0
      %1702 = vmatpush1.bf16.msra.mxu0 0
      %1703 = vmatprep.subr.bf16.mxu0 0
      %1704 = vmatpush1.bf16.msra.mxu0 0
      %1705 = vmatprep.subr.bf16.mxu0 0
      %1706 = vmatpush1.bf16.msra.mxu0 0
      %1707 = vmatprep.subr.bf16.mxu0 0
      %1708 = vmatpush1.bf16.msra.mxu0 0
      %1709 = vmatprep.subr.bf16.mxu0 0
      %1710 = vmatpush1.bf16.msra.mxu0 0
      %1711 = vmatprep.mubr.bf16.mxu0 0
      %1712 = vmatmul.mubr.bf16.gmra.mrb[0].mxu0 %v1665
      %v1713 = vpop.f32.mrb[0].mxu0
      %v1714 = vadd.f32 %v1662, %v1713
      %v1715 = vpop.f32.mrb[0].mxu0
      %v1716 = vpop.f32.mrb[0].mxu0
      %v1717 = vadd.f32 %v1662, %v1716
      %v1718 = vpop.f32.mrb[0].mxu0
      %1719 = vmatprep.mubr.bf16.mxu0 0
      %1720 = vmatmul.mubr.bf16.gmra.mrb[0].mxu0 %v1668
      %v1721 = vpop.f32.mrb[0].mxu0
      %v1722 = vadd.f32 %v1662, %v1721
      %v1723 = vpop.f32.mrb[0].mxu0
      %v1724 = vpop.f32.mrb[0].mxu0
      %v1725 = vadd.f32 %v1662, %v1724
      %v1726 = vpop.f32.mrb[0].mxu0
      %1727 = vmatprep.mubr.bf16.mxu0 0
      %1728 = vmatmul.mubr.bf16.gmra.mrb[0].mxu0 %v1671
      %v1729 = vpop.f32.mrb[0].mxu0
      %v1730 = vadd.f32 %v1662, %v1729
      %v1731 = vpop.f32.mrb[0].mxu0
      %v1732 = vpop.f32.mrb[0].mxu0
      %v1733 = vadd.f32 %v1662, %v1732
      %v1734 = vpop.f32.mrb[0].mxu0
      %1735 = vmatprep.mubr.bf16.mxu0 0
      %1736 = vmatmul.mubr.bf16.gmra.mrb[0].mxu0 %v1674
      %v1737 = vpop.f32.mrb[0].mxu0
      %v1738 = vadd.f32 %v1662, %v1737
      %v1739 = vpop.f32.mrb[0].mxu0
      %v1740 = vpop.f32.mrb[0].mxu0
      %v1741 = vadd.f32 %v1662, %v1740
      %v1742 = vpop.f32.mrb[0].mxu0
      %1743 = vdwg.mxu0
      %v1744 = vadd.f32 %v1714, %v283
      %v1745 = vadd.f32 %v1717, %v284
      %v1746 = vadd.f32 %v1722, %v285
      %v1747 = vadd.f32 %v1725, %v286
      %v1748 = vadd.f32 %v1730, %v287
      %v1749 = vadd.f32 %v1733, %v288
      %v1750 = vadd.f32 %v1738, %v289
      %v1751 = vadd.f32 %v1741, %v290
      %v1752 = vmax.f32 %v1744, 0.0
      %v1753 = vmax.f32 %v1745, 0.0
      %v1754 = vmax.f32 %v1746, 0.0
      %v1755 = vmax.f32 %v1747, 0.0
      %v1756 = vmax.f32 %v1748, 0.0
      %v1757 = vmax.f32 %v1749, 0.0
      %v1758 = vmax.f32 %v1750, 0.0
      %v1759 = vmax.f32 %v1751, 0.0
      %1760 = vst.msk [vmem:[%s280] sm:$0xff] %vm318, %v1752
      %1761 = vst.msk [vmem:[%s280 + $0x8] sm:$0xff] %vm318, %v1753
      %1762 = vst.msk [vmem:[%s280 + $0x10] sm:$0xff] %vm318, %v1754
      %1763 = vst.msk [vmem:[%s280 + $0x18] sm:$0xff] %vm318, %v1755
      %1764 = vst.msk [vmem:[%s280 + $0x20] sm:$0xff] %vm318, %v1756
      %1765 = vst.msk [vmem:[%s280 + $0x28] sm:$0xff] %vm318, %v1757
      %1766 = vst.msk [vmem:[%s280 + $0x30] sm:$0xff] %vm318, %v1758
      %1767 = vst.msk [vmem:[%s280 + $0x38] sm:$0xff] %vm318, %v1759
      %s1768 = smul.u32 8, %s18
      %p1769 = scmp.lt.s32.totalorder %s1768, 15
      %s1770 = scalar_select %p1769, %s1768, 15
      %s1771 = smul.addr %s1770, 8
      %s1772 = scalar_lea.vmem %s7, %s1771
      // Predicated region
      $region49: #{tpu_custom_call.1} parent=47 // pred_check
        %p1773 = pneg %p188
      $region50: #{tpu_custom_call.1} parent=47 // pred_check_branch
        %1775 = sbr.rel (%p1773) target = $region52
      $region51: #{tpu_custom_call.1} parent=47 // pred_region
        %s1776 = smul.u32 8, %s18
      $region52: #{tpu_custom_call.1} parent=47 // pred_fallthru
        _
    $region48: #{tpu_custom_call.1} parent=5 // pred_fallthru
      _
    %p1777 = scmp.le.s32.totalorder 2, %s13
    // Predicated region
    $region53: #{tpu_custom_call.1} parent=5 // pred_check
      %p1778 = pneg %p1777
    $region54: #{tpu_custom_call.1} parent=5 // pred_check_branch
      %1780 = sbr.rel (%p1778) target = $region56
    $region55: #{tpu_custom_call.1} parent=5 // pred_region
      %s1781 = ssub.s32 %s13, 2
      // Predicated region
      $region57: #{tpu_custom_call.1} parent=55 // pred_check
        %p1782 = pneg %p194
      $region58: #{tpu_custom_call.1} parent=55 // pred_check_branch
        %1784 = sbr.rel (%p1782) target = $region60
      $region59: #{tpu_custom_call.1} parent=55 // pred_region
        %s1785 = smul.u32 8, %s19
        %p1786 = scmp.lt.s32.totalorder %s1785, 15
        %s1787 = scalar_select %p1786, %s1785, 15
        %s1788 = smul.addr %s1787, 8
        %s1789 = scalar_lea.vmem %s7, %s1788
      $region60: #{tpu_custom_call.1} parent=55 // pred_fallthru
        _
    $region56: #{tpu_custom_call.1} parent=5 // pred_fallthru
      _
  $region6: #{tpu_custom_call.1} parent=0 // loop_footer
    %s17 = sadd.s32 1, %s13
  $region7: #{tpu_custom_call.1} parent=0 // loop_footer_branch
    %12 = sbr.rel target = $region3
  $region8: #{tpu_custom_call.1} parent=0 // loop_exit
    _

</llo_original>
